<compile_context>
chip_gen: v5e
topology: v5e:2x2
jax: 0.10.0
libtpu: 0.0.40
codegen_flags: <defaults>
</compile_context>

<pallas_src>
import math
import functools

import jax
import jax.numpy as jnp
import numpy as np
from jax.experimental import pallas as pl
from jax.experimental.pallas import tpu as pltpu

# ----------------------------- model config (small) -------------------------
B = 2            # batch
S = 8            # seq len
DIM = 32         # model dim
H = 4            # n_heads (= n_kv_heads, gqa_factor = 1)
HD = DIM // H    # head_dim = 8
INTER = 64       # intermediate_size
EPS = 1e-8
ROPE_THETA = 10000.0
MAX_POS = 32


# ------------------------------- Pallas kernel ------------------------------
def transformer_block_kernel(
    x_ref, cos_ref, sin_ref,
    wna_ref, wnm_ref,
    wqkv_ref, bqkv_ref, wo_ref, bo_ref,
    wgu_ref, bgu_ref, wd_ref, bd_ref,
    o_ref, attn_sc, *, nb,
):
    # x_ref: (nb*S, DIM) rows for `nb` batch elements stacked along sublanes.
    x = x_ref[...].astype(jnp.float32)

    # Broadcast per-pair RoPE tables across heads once (hoisted, cheap layout op).
    cos_d = jnp.concatenate([cos_ref[...]] * H, axis=-1)   # (nb*S, DIM)
    sin_d = jnp.concatenate([sin_ref[...]] * H, axis=-1)   # (nb*S, DIM), signs folded

    def rms(v, w):
        ms = jnp.mean(v * v, axis=-1, keepdims=True)
        return w * v * jax.lax.rsqrt(ms + EPS)

    # ---- attention sub-block: single fused QKV matmul ----
    xn = rms(x, wna_ref[...])
    qkv = jnp.dot(xn, wqkv_ref[...], preferred_element_type=jnp.float32) + bqkv_ref[...]
    # columns: [q, q@P, k, k@P, v]  (q already scaled by 1/sqrt(HD))
    q = qkv[:, 0 * DIM:1 * DIM] * cos_d + qkv[:, 1 * DIM:2 * DIM] * sin_d
    k = qkv[:, 2 * DIM:3 * DIM] * cos_d + qkv[:, 3 * DIM:4 * DIM] * sin_d
    v = qkv[:, 4 * DIM:5 * DIM]

    lane = jax.lax.broadcasted_iota(jnp.int32, (S, DIM), 1)

    for bb in range(nb):
        r0 = bb * S
        qb = q[r0:r0 + S, :]
        kb = k[r0:r0 + S, :]
        vb = v[r0:r0 + S, :]
        acc = None
        for h in range(H):
            c0 = h * HD
            qh = qb[:, c0:c0 + HD]
            kh = kb[:, c0:c0 + HD]
            s = jnp.dot(qh, kh.T, preferred_element_type=jnp.float32)  # scale pre-folded
            s = s - jnp.max(s, axis=-1, keepdims=True)
            p = jnp.exp(s)
            p = p * pl.reciprocal(jnp.sum(p, axis=-1, keepdims=True), approx=True)
            # Mask V to this head's lanes so the head output lands directly in its
            # final lane positions (no lane concat / shuffle afterwards).
            vh = jnp.where((lane >= c0) & (lane < c0 + HD), vb, 0.0)
            ho = jnp.dot(p, vh, preferred_element_type=jnp.float32)    # (S, DIM)
            acc = ho if acc is None else acc + ho
        attn_sc[r0:r0 + S, :] = acc          # sublane-aligned full-lane store

    attn_o = jnp.dot(attn_sc[...], wo_ref[...],
                     preferred_element_type=jnp.float32) + bo_ref[...]
    x1 = x + attn_o

    # ---- MLP sub-block (SwiGLU), fused gate/up matmul ----
    xn2 = rms(x1, wnm_ref[...])
    gu = jnp.dot(xn2, wgu_ref[...], preferred_element_type=jnp.float32) + bgu_ref[...]
    g = gu[:, :INTER]
    u = gu[:, INTER:]
    hgate = g * jax.nn.sigmoid(g) * u
    d = jnp.dot(hgate, wd_ref[...], preferred_element_type=jnp.float32) + bd_ref[...]

    o_ref[...] = (x1 + d).astype(o_ref.dtype)


# --------------------------------- wrapper -----------------------------------
def transformer_block(x, cos_half, sin_half, params):
    b, s, d = x.shape
    scale = 1.0 / math.sqrt(HD)

    # Block-diagonal pair-swap permutation (x @ P)[2i] = x[2i+1], folded into weights.
    p_small = np.zeros((HD, HD), np.float32)
    for i in range(HD // 2):
        p_small[2 * i + 1, 2 * i] = 1.0
        p_small[2 * i, 2 * i + 1] = 1.0
    P = jnp.asarray(np.kron(np.eye(H, dtype=np.float32), p_small))   # (DIM, DIM)

    wq_s = params["wq"] * scale
    bq_s = params["bq"] * scale
    wqkv = jnp.concatenate(
        [wq_s, wq_s @ P, params["wk"], params["wk"] @ P, params["wv"]], axis=1)
    bqkv = jnp.concatenate(
        [bq_s, bq_s @ P, params["bk"], params["bk"] @ P, params["bv"]], axis=1)
    wgu = jnp.concatenate([params["wg"], params["wu"]], axis=1)
    bgu = jnp.concatenate([params["bg"], params["bu"]], axis=1)

    # Interleave RoPE tables per pair to head width; fold the (-sin, +sin) signs.
    cos_f = jnp.repeat(cos_half, 2, axis=-1)                        # (B, S, HD)
    sign = jnp.tile(jnp.array([-1.0, 1.0], jnp.float32), HD // 2)
    sin_f = jnp.repeat(sin_half, 2, axis=-1) * sign                 # (B, S, HD)

    x2d = x.reshape(b * s, d)
    cos2d = cos_f.reshape(b * s, HD)
    sin2d = sin_f.reshape(b * s, HD)

    # Single fat grid step on single-TC chips (v5e/v6e); keep batch on the grid
    # on v7x so it shards across the two TensorCores. Either choice is correct.
    try:
        kind = jax.devices()[0].device_kind.lower()
    except Exception:
        kind = ""
    nb = 1 if ("v7" in kind) else b
    gn = b // nb
    rows = nb * s

    def act_spec(width):
        return pl.BlockSpec((rows, width), lambda i: (i, 0))

    def whole(arr):
        return pl.BlockSpec(arr.shape, lambda i: (0,) * arr.ndim)

    args = (
        x2d, cos2d, sin2d,
        params["w_norm_attn"], params["w_norm_mlp"],
        wqkv, bqkv, params["wo"], params["bo"],
        wgu, bgu, params["wd"], params["bd"],
    )
    in_specs = [act_spec(d), act_spec(HD), act_spec(HD)] + [whole(a) for a in args[3:]]

    out2d = pl.pallas_call(
        functools.partial(transformer_block_kernel, nb=nb),
        out_shape=jax.ShapeDtypeStruct((b * s, d), x.dtype),
        grid_spec=pltpu.PrefetchScalarGridSpec(
            num_scalar_prefetch=0,
            grid=(gn,),
            in_specs=in_specs,
            out_specs=pl.BlockSpec((rows, d), lambda i: (i, 0)),
            scratch_shapes=[pltpu.VMEM((rows, d), jnp.float32)],
        ),
        compiler_params=pltpu.CompilerParams(
            dimension_semantics=("parallel",),
        ),
    )(*args)
    return out2d.reshape(b, s, d)


# ----------------------------- plain-JAX reference --------------------------
def rope_ref(t, cos_half, sin_half):
    c = cos_half[:, None, :, :]
    s = sin_half[:, None, :, :]
    xe = t[..., ::2]
    xo = t[..., 1::2]
    re = xe * c - xo * s
    ro = xe * s + xo * c
    return jnp.stack([re, ro], axis=-1).reshape(t.shape)


def reference_block(x, cos_half, sin_half, params):
    def rms(v, w):
        return w[0] * v * jax.lax.rsqrt(jnp.mean(v * v, -1, keepdims=True) + EPS)

    xn = rms(x, params["w_norm_attn"])
    q = xn @ params["wq"] + params["bq"][0]
    k = xn @ params["wk"] + params["bk"][0]
    v = xn @ params["wv"] + params["bv"][0]
    bsz, seq, _ = x.shape
    q = q.reshape(bsz, seq, H, HD).transpose(0, 2, 1, 3)
    k = k.reshape(bsz, seq, H, HD).transpose(0, 2, 1, 3)
    v = v.reshape(bsz, seq, H, HD).transpose(0, 2, 1, 3)
    q = rope_ref(q, cos_half, sin_half)
    k = rope_ref(k, cos_half, sin_half)
    scores = jnp.einsum("bhqd,bhkd->bhqk", q, k) / math.sqrt(HD)
    p = jax.nn.softmax(scores, axis=-1)
    attn = jnp.einsum("bhqk,bhkd->bhqd", p, v)
    attn = attn.transpose(0, 2, 1, 3).reshape(bsz, seq, DIM)
    attn_o = attn @ params["wo"] + params["bo"][0]
    x1 = x + attn_o
    xn2 = rms(x1, params["w_norm_mlp"])
    g = xn2 @ params["wg"] + params["bg"][0]
    u = xn2 @ params["wu"] + params["bu"][0]
    dd = (jax.nn.silu(g) * u) @ params["wd"] + params["bd"][0]
    return x1 + dd


# ---------------------------------- main -------------------------------------
if __name__ == "__main__":
    key = jax.random.PRNGKey(0)

    def nxt():
        global key
        key, sub = jax.random.split(key)
        return sub

    def init(shape, scale=0.05):
        return scale * jax.random.normal(nxt(), shape, jnp.float32)

    params = {
        "w_norm_attn": jnp.ones((1, DIM), jnp.float32),
        "w_norm_mlp": jnp.ones((1, DIM), jnp.float32),
        # Linear weights stored as (in, out) == torch_weight.T
        "wq": init((DIM, H * HD)), "bq": init((1, H * HD)),
        "wk": init((DIM, H * HD)), "bk": init((1, H * HD)),
        "wv": init((DIM, H * HD)), "bv": init((1, H * HD)),
        "wo": init((H * HD, DIM)), "bo": init((1, DIM)),
        "wg": init((DIM, INTER)), "bg": init((1, INTER)),
        "wu": init((DIM, INTER)), "bu": init((1, INTER)),
        "wd": init((INTER, DIM)), "bd": init((1, DIM)),
    }

    x = jax.random.normal(nxt(), (B, S, DIM), jnp.float32)
    position_ids = jnp.broadcast_to(jnp.arange(S, dtype=jnp.int32), (B, S))

    # RoPE tables (glue, plain JAX): cos/sin gathered at position_ids.
    inv_freq = 1.0 / (ROPE_THETA ** (jnp.arange(0, HD, 2, dtype=jnp.float32) / HD))
    positions = jnp.arange(MAX_POS, dtype=jnp.float32)
    theta = jnp.outer(positions, inv_freq)              # (MAX_POS, HD//2)
    cos_half = jnp.cos(theta)[position_ids]             # (B, S, HD//2)
    sin_half = jnp.sin(theta)[position_ids]             # (B, S, HD//2)

    out = transformer_block(x, cos_half, sin_half, params)
    out = jax.block_until_ready(out)

    ref = reference_block(x, cos_half, sin_half, params)
    # Slightly loosened tolerance: softmax denom uses the EUP approximate reciprocal.
    np.testing.assert_allclose(np.asarray(out), np.asarray(ref), rtol=1e-3, atol=1e-3)

    print("KERNEL_OK")
</pallas_src>

<mosaic_0001>
module attributes {stable_mosaic.version = 11 : i64} {
  func.func @transformer_block_kernel(%arg0: i32, %arg1: memref<16x32xf32, #tpu.memory_space<vmem>>, %arg2: memref<16x8xf32, #tpu.memory_space<vmem>>, %arg3: memref<16x8xf32, #tpu.memory_space<vmem>>, %arg4: memref<1x32xf32, #tpu.memory_space<vmem>>, %arg5: memref<1x32xf32, #tpu.memory_space<vmem>>, %arg6: memref<32x160xf32, #tpu.memory_space<vmem>>, %arg7: memref<1x160xf32, #tpu.memory_space<vmem>>, %arg8: memref<32x32xf32, #tpu.memory_space<vmem>>, %arg9: memref<1x32xf32, #tpu.memory_space<vmem>>, %arg10: memref<32x128xf32, #tpu.memory_space<vmem>>, %arg11: memref<1x128xf32, #tpu.memory_space<vmem>>, %arg12: memref<64x32xf32, #tpu.memory_space<vmem>>, %arg13: memref<1x32xf32, #tpu.memory_space<vmem>>, %arg14: memref<16x32xf32, #tpu.memory_space<vmem>>, %arg15: memref<16x32xf32, #tpu.memory_space<vmem>>) attributes {dimension_semantics = [#tpu.dimension_semantics<parallel>], iteration_bounds = array<i64: 1>, scalar_prefetch = 0 : i64, scratch_operands = 1 : i64, tpu.core_type = #tpu.core_type<tc>, window_params = [{transform_indices = @transform_0, window_bounds = array<i64: 16, 32>}, {transform_indices = @transform_1, window_bounds = array<i64: 16, 8>}, {transform_indices = @transform_2, window_bounds = array<i64: 16, 8>}, {pipeline_mode = #tpu.pipeline_mode<synchronous>, transform_indices = @transform_3, window_bounds = array<i64: 1, 32>}, {pipeline_mode = #tpu.pipeline_mode<synchronous>, transform_indices = @transform_4, window_bounds = array<i64: 1, 32>}, {pipeline_mode = #tpu.pipeline_mode<synchronous>, transform_indices = @transform_5, window_bounds = array<i64: 32, 160>}, {pipeline_mode = #tpu.pipeline_mode<synchronous>, transform_indices = @transform_6, window_bounds = array<i64: 1, 160>}, {pipeline_mode = #tpu.pipeline_mode<synchronous>, transform_indices = @transform_7, window_bounds = array<i64: 32, 32>}, {pipeline_mode = #tpu.pipeline_mode<synchronous>, transform_indices = @transform_8, window_bounds = array<i64: 1, 32>}, {pipeline_mode = #tpu.pipeline_mode<synchronous>, transform_indices = @transform_9, window_bounds = array<i64: 32, 128>}, {pipeline_mode = #tpu.pipeline_mode<synchronous>, transform_indices = @transform_10, window_bounds = array<i64: 1, 128>}, {pipeline_mode = #tpu.pipeline_mode<synchronous>, transform_indices = @transform_11, window_bounds = array<i64: 64, 32>}, {pipeline_mode = #tpu.pipeline_mode<synchronous>, transform_indices = @transform_12, window_bounds = array<i64: 1, 32>}, {transform_indices = @transform_13, window_bounds = array<i64: 16, 32>}]} {
    %c0 = arith.constant 0 : index
    %c0_0 = arith.constant 0 : index
    %0 = vector.load %arg1[%c0, %c0_0] : memref<16x32xf32, #tpu.memory_space<vmem>>, vector<16x32xf32>
    %c0_1 = arith.constant 0 : index
    %c0_2 = arith.constant 0 : index
    %1 = vector.load %arg2[%c0_1, %c0_2] : memref<16x8xf32, #tpu.memory_space<vmem>>, vector<16x8xf32>
    %2 = tpu.concatenate %1, %1, %1, %1 in 1 : vector<16x8xf32>, vector<16x8xf32>, vector<16x8xf32>, vector<16x8xf32> -> vector<16x32xf32>
    %c0_3 = arith.constant 0 : index
    %c0_4 = arith.constant 0 : index
    %3 = vector.load %arg3[%c0_3, %c0_4] : memref<16x8xf32, #tpu.memory_space<vmem>>, vector<16x8xf32>
    %4 = tpu.concatenate %3, %3, %3, %3 in 1 : vector<16x8xf32>, vector<16x8xf32>, vector<16x8xf32>, vector<16x8xf32> -> vector<16x32xf32>
    %c0_5 = arith.constant 0 : index
    %c0_6 = arith.constant 0 : index
    %5 = vector.load %arg4[%c0_5, %c0_6] : memref<1x32xf32, #tpu.memory_space<vmem>>, vector<1x32xf32>
    %6 = arith.mulf %0, %0 : vector<16x32xf32>
    %cst = arith.constant dense<0.000000e+00> : vector<16xf32>
    %7 = vector.multi_reduction <add>, %6, %cst [1] : vector<16x32xf32> to vector<16xf32>
    %8 = vector.shape_cast %7 : vector<16xf32> to vector<16x1xf32>
    %cst_7 = arith.constant 3.200000e+01 : f32
    %9 = vector.broadcast %cst_7 : f32 to vector<16x1xf32>
    %10 = arith.divf %8, %9 : vector<16x1xf32>
    %11 = vector.broadcast %5 : vector<1x32xf32> to vector<16x32xf32>
    %12 = arith.mulf %11, %0 : vector<16x32xf32>
    %cst_8 = arith.constant 9.99999993E-9 : f32
    %13 = vector.broadcast %cst_8 : f32 to vector<16x1xf32>
    %14 = arith.addf %10, %13 : vector<16x1xf32>
    %15 = math.rsqrt %14 : vector<16x1xf32>
    %16 = vector.broadcast %15 : vector<16x1xf32> to vector<16x32xf32>
    %17 = arith.mulf %12, %16 : vector<16x32xf32>
    %c0_9 = arith.constant 0 : index
    %c0_10 = arith.constant 0 : index
    %18 = vector.load %arg6[%c0_9, %c0_10] : memref<32x160xf32, #tpu.memory_space<vmem>>, vector<32x160xf32>
    %cst_11 = arith.constant dense<0.000000e+00> : vector<16x160xf32>
    %19 = tpu.matmul %17, %18, %cst_11 {dimension_numbers = #tpu.dot_dimension_numbers<[1], [0], [0], [1], [0, 0, 1, 1], [], []>} : vector<16x32xf32>, vector<32x160xf32>, vector<16x160xf32> -> vector<16x160xf32>
    %c0_12 = arith.constant 0 : index
    %c0_13 = arith.constant 0 : index
    %20 = vector.load %arg7[%c0_12, %c0_13] : memref<1x160xf32, #tpu.memory_space<vmem>>, vector<1x160xf32>
    %21 = vector.broadcast %20 : vector<1x160xf32> to vector<16x160xf32>
    %22 = arith.addf %19, %21 : vector<16x160xf32>
    %23 = vector.extract_strided_slice %22 {offsets = [0, 0], sizes = [16, 32], strides = [1, 1]} : vector<16x160xf32> to vector<16x32xf32>
    %24 = arith.mulf %23, %2 : vector<16x32xf32>
    %25 = vector.extract_strided_slice %22 {offsets = [0, 32], sizes = [16, 32], strides = [1, 1]} : vector<16x160xf32> to vector<16x32xf32>
    %26 = arith.mulf %25, %4 : vector<16x32xf32>
    %27 = arith.addf %24, %26 : vector<16x32xf32>
    %28 = vector.extract_strided_slice %22 {offsets = [0, 64], sizes = [16, 32], strides = [1, 1]} : vector<16x160xf32> to vector<16x32xf32>
    %29 = arith.mulf %28, %2 : vector<16x32xf32>
    %30 = vector.extract_strided_slice %22 {offsets = [0, 96], sizes = [16, 32], strides = [1, 1]} : vector<16x160xf32> to vector<16x32xf32>
    %31 = arith.mulf %30, %4 : vector<16x32xf32>
    %32 = arith.addf %29, %31 : vector<16x32xf32>
    %33 = vector.extract_strided_slice %22 {offsets = [0, 128], sizes = [16, 32], strides = [1, 1]} : vector<16x160xf32> to vector<16x32xf32>
    %34 = tpu.iota {dimensions = array<i32: 1>} : vector<8x32xi32>
    %35 = vector.extract_strided_slice %27 {offsets = [0, 0], sizes = [8, 32], strides = [1, 1]} : vector<16x32xf32> to vector<8x32xf32>
    %36 = vector.extract_strided_slice %32 {offsets = [0, 0], sizes = [8, 32], strides = [1, 1]} : vector<16x32xf32> to vector<8x32xf32>
    %37 = vector.extract_strided_slice %33 {offsets = [0, 0], sizes = [8, 32], strides = [1, 1]} : vector<16x32xf32> to vector<8x32xf32>
    %38 = vector.extract_strided_slice %35 {offsets = [0, 0], sizes = [8, 8], strides = [1, 1]} : vector<8x32xf32> to vector<8x8xf32>
    %39 = vector.extract_strided_slice %36 {offsets = [0, 0], sizes = [8, 8], strides = [1, 1]} : vector<8x32xf32> to vector<8x8xf32>
    %40 = tpu.transpose %39, [1, 0] : vector<8x8xf32> -> vector<8x8xf32>
    %cst_14 = arith.constant dense<0.000000e+00> : vector<8x8xf32>
    %41 = tpu.matmul %38, %40, %cst_14 {dimension_numbers = #tpu.dot_dimension_numbers<[1], [0], [0], [1], [0, 0, 1, 1], [], []>} : vector<8x8xf32>, vector<8x8xf32>, vector<8x8xf32> -> vector<8x8xf32>
    %cst_15 = arith.constant dense<0xFF800000> : vector<8xf32>
    %42 = vector.multi_reduction <maximumf>, %41, %cst_15 [1] : vector<8x8xf32> to vector<8xf32>
    %43 = vector.shape_cast %42 : vector<8xf32> to vector<8x1xf32>
    %44 = vector.broadcast %43 : vector<8x1xf32> to vector<8x8xf32>
    %45 = arith.subf %41, %44 : vector<8x8xf32>
    %46 = math.exp %45 : vector<8x8xf32>
    %cst_16 = arith.constant dense<0.000000e+00> : vector<8xf32>
    %47 = vector.multi_reduction <add>, %46, %cst_16 [1] : vector<8x8xf32> to vector<8xf32>
    %48 = vector.shape_cast %47 : vector<8xf32> to vector<8x1xf32>
    %49 = tpu.reciprocal %48 {approx = true} : vector<8x1xf32> -> vector<8x1xf32>
    %50 = vector.broadcast %49 : vector<8x1xf32> to vector<8x8xf32>
    %51 = arith.mulf %46, %50 : vector<8x8xf32>
    %c0_i32 = arith.constant 0 : i32
    %52 = vector.broadcast %c0_i32 : i32 to vector<8x32xi32>
    %53 = arith.cmpi sge, %34, %52 : vector<8x32xi32>
    %c8_i32 = arith.constant 8 : i32
    %54 = vector.broadcast %c8_i32 : i32 to vector<8x32xi32>
    %55 = arith.cmpi slt, %34, %54 : vector<8x32xi32>
    %56 = arith.andi %53, %55 : vector<8x32xi1>
    %cst_17 = arith.constant 0.000000e+00 : f32
    %57 = vector.broadcast %cst_17 : f32 to vector<8x32xf32>
    %58 = arith.select %56, %37, %57 : vector<8x32xi1>, vector<8x32xf32>
    %cst_18 = arith.constant dense<0.000000e+00> : vector<8x32xf32>
    %59 = tpu.matmul %51, %58, %cst_18 {dimension_numbers = #tpu.dot_dimension_numbers<[1], [0], [0], [1], [0, 0, 1, 1], [], []>} : vector<8x8xf32>, vector<8x32xf32>, vector<8x32xf32> -> vector<8x32xf32>
    %60 = vector.extract_strided_slice %35 {offsets = [0, 8], sizes = [8, 8], strides = [1, 1]} : vector<8x32xf32> to vector<8x8xf32>
    %61 = vector.extract_strided_slice %36 {offsets = [0, 8], sizes = [8, 8], strides = [1, 1]} : vector<8x32xf32> to vector<8x8xf32>
    %62 = tpu.transpose %61, [1, 0] : vector<8x8xf32> -> vector<8x8xf32>
    %cst_19 = arith.constant dense<0.000000e+00> : vector<8x8xf32>
    %63 = tpu.matmul %60, %62, %cst_19 {dimension_numbers = #tpu.dot_dimension_numbers<[1], [0], [0], [1], [0, 0, 1, 1], [], []>} : vector<8x8xf32>, vector<8x8xf32>, vector<8x8xf32> -> vector<8x8xf32>
    %cst_20 = arith.constant dense<0xFF800000> : vector<8xf32>
    %64 = vector.multi_reduction <maximumf>, %63, %cst_20 [1] : vector<8x8xf32> to vector<8xf32>
    %65 = vector.shape_cast %64 : vector<8xf32> to vector<8x1xf32>
    %66 = vector.broadcast %65 : vector<8x1xf32> to vector<8x8xf32>
    %67 = arith.subf %63, %66 : vector<8x8xf32>
    %68 = math.exp %67 : vector<8x8xf32>
    %cst_21 = arith.constant dense<0.000000e+00> : vector<8xf32>
    %69 = vector.multi_reduction <add>, %68, %cst_21 [1] : vector<8x8xf32> to vector<8xf32>
    %70 = vector.shape_cast %69 : vector<8xf32> to vector<8x1xf32>
    %71 = tpu.reciprocal %70 {approx = true} : vector<8x1xf32> -> vector<8x1xf32>
    %72 = vector.broadcast %71 : vector<8x1xf32> to vector<8x8xf32>
    %73 = arith.mulf %68, %72 : vector<8x8xf32>
    %c8_i32_22 = arith.constant 8 : i32
    %74 = vector.broadcast %c8_i32_22 : i32 to vector<8x32xi32>
    %75 = arith.cmpi sge, %34, %74 : vector<8x32xi32>
    %c16_i32 = arith.constant 16 : i32
    %76 = vector.broadcast %c16_i32 : i32 to vector<8x32xi32>
    %77 = arith.cmpi slt, %34, %76 : vector<8x32xi32>
    %78 = arith.andi %75, %77 : vector<8x32xi1>
    %cst_23 = arith.constant 0.000000e+00 : f32
    %79 = vector.broadcast %cst_23 : f32 to vector<8x32xf32>
    %80 = arith.select %78, %37, %79 : vector<8x32xi1>, vector<8x32xf32>
    %cst_24 = arith.constant dense<0.000000e+00> : vector<8x32xf32>
    %81 = tpu.matmul %73, %80, %cst_24 {dimension_numbers = #tpu.dot_dimension_numbers<[1], [0], [0], [1], [0, 0, 1, 1], [], []>} : vector<8x8xf32>, vector<8x32xf32>, vector<8x32xf32> -> vector<8x32xf32>
    %82 = arith.addf %59, %81 : vector<8x32xf32>
    %83 = vector.extract_strided_slice %35 {offsets = [0, 16], sizes = [8, 8], strides = [1, 1]} : vector<8x32xf32> to vector<8x8xf32>
    %84 = vector.extract_strided_slice %36 {offsets = [0, 16], sizes = [8, 8], strides = [1, 1]} : vector<8x32xf32> to vector<8x8xf32>
    %85 = tpu.transpose %84, [1, 0] : vector<8x8xf32> -> vector<8x8xf32>
    %cst_25 = arith.constant dense<0.000000e+00> : vector<8x8xf32>
    %86 = tpu.matmul %83, %85, %cst_25 {dimension_numbers = #tpu.dot_dimension_numbers<[1], [0], [0], [1], [0, 0, 1, 1], [], []>} : vector<8x8xf32>, vector<8x8xf32>, vector<8x8xf32> -> vector<8x8xf32>
    %cst_26 = arith.constant dense<0xFF800000> : vector<8xf32>
    %87 = vector.multi_reduction <maximumf>, %86, %cst_26 [1] : vector<8x8xf32> to vector<8xf32>
    %88 = vector.shape_cast %87 : vector<8xf32> to vector<8x1xf32>
    %89 = vector.broadcast %88 : vector<8x1xf32> to vector<8x8xf32>
    %90 = arith.subf %86, %89 : vector<8x8xf32>
    %91 = math.exp %90 : vector<8x8xf32>
    %cst_27 = arith.constant dense<0.000000e+00> : vector<8xf32>
    %92 = vector.multi_reduction <add>, %91, %cst_27 [1] : vector<8x8xf32> to vector<8xf32>
    %93 = vector.shape_cast %92 : vector<8xf32> to vector<8x1xf32>
    %94 = tpu.reciprocal %93 {approx = true} : vector<8x1xf32> -> vector<8x1xf32>
    %95 = vector.broadcast %94 : vector<8x1xf32> to vector<8x8xf32>
    %96 = arith.mulf %91, %95 : vector<8x8xf32>
    %c16_i32_28 = arith.constant 16 : i32
    %97 = vector.broadcast %c16_i32_28 : i32 to vector<8x32xi32>
    %98 = arith.cmpi sge, %34, %97 : vector<8x32xi32>
    %c24_i32 = arith.constant 24 : i32
    %99 = vector.broadcast %c24_i32 : i32 to vector<8x32xi32>
    %100 = arith.cmpi slt, %34, %99 : vector<8x32xi32>
    %101 = arith.andi %98, %100 : vector<8x32xi1>
    %cst_29 = arith.constant 0.000000e+00 : f32
    %102 = vector.broadcast %cst_29 : f32 to vector<8x32xf32>
    %103 = arith.select %101, %37, %102 : vector<8x32xi1>, vector<8x32xf32>
    %cst_30 = arith.constant dense<0.000000e+00> : vector<8x32xf32>
    %104 = tpu.matmul %96, %103, %cst_30 {dimension_numbers = #tpu.dot_dimension_numbers<[1], [0], [0], [1], [0, 0, 1, 1], [], []>} : vector<8x8xf32>, vector<8x32xf32>, vector<8x32xf32> -> vector<8x32xf32>
    %105 = arith.addf %82, %104 : vector<8x32xf32>
    %106 = vector.extract_strided_slice %35 {offsets = [0, 24], sizes = [8, 8], strides = [1, 1]} : vector<8x32xf32> to vector<8x8xf32>
    %107 = vector.extract_strided_slice %36 {offsets = [0, 24], sizes = [8, 8], strides = [1, 1]} : vector<8x32xf32> to vector<8x8xf32>
    %108 = tpu.transpose %107, [1, 0] : vector<8x8xf32> -> vector<8x8xf32>
    %cst_31 = arith.constant dense<0.000000e+00> : vector<8x8xf32>
    %109 = tpu.matmul %106, %108, %cst_31 {dimension_numbers = #tpu.dot_dimension_numbers<[1], [0], [0], [1], [0, 0, 1, 1], [], []>} : vector<8x8xf32>, vector<8x8xf32>, vector<8x8xf32> -> vector<8x8xf32>
    %cst_32 = arith.constant dense<0xFF800000> : vector<8xf32>
    %110 = vector.multi_reduction <maximumf>, %109, %cst_32 [1] : vector<8x8xf32> to vector<8xf32>
    %111 = vector.shape_cast %110 : vector<8xf32> to vector<8x1xf32>
    %112 = vector.broadcast %111 : vector<8x1xf32> to vector<8x8xf32>
    %113 = arith.subf %109, %112 : vector<8x8xf32>
    %114 = math.exp %113 : vector<8x8xf32>
    %cst_33 = arith.constant dense<0.000000e+00> : vector<8xf32>
    %115 = vector.multi_reduction <add>, %114, %cst_33 [1] : vector<8x8xf32> to vector<8xf32>
    %116 = vector.shape_cast %115 : vector<8xf32> to vector<8x1xf32>
    %117 = tpu.reciprocal %116 {approx = true} : vector<8x1xf32> -> vector<8x1xf32>
    %118 = vector.broadcast %117 : vector<8x1xf32> to vector<8x8xf32>
    %119 = arith.mulf %114, %118 : vector<8x8xf32>
    %c24_i32_34 = arith.constant 24 : i32
    %120 = vector.broadcast %c24_i32_34 : i32 to vector<8x32xi32>
    %121 = arith.cmpi sge, %34, %120 : vector<8x32xi32>
    %c32_i32 = arith.constant 32 : i32
    %122 = vector.broadcast %c32_i32 : i32 to vector<8x32xi32>
    %123 = arith.cmpi slt, %34, %122 : vector<8x32xi32>
    %124 = arith.andi %121, %123 : vector<8x32xi1>
    %cst_35 = arith.constant 0.000000e+00 : f32
    %125 = vector.broadcast %cst_35 : f32 to vector<8x32xf32>
    %126 = arith.select %124, %37, %125 : vector<8x32xi1>, vector<8x32xf32>
    %cst_36 = arith.constant dense<0.000000e+00> : vector<8x32xf32>
    %127 = tpu.matmul %119, %126, %cst_36 {dimension_numbers = #tpu.dot_dimension_numbers<[1], [0], [0], [1], [0, 0, 1, 1], [], []>} : vector<8x8xf32>, vector<8x32xf32>, vector<8x32xf32> -> vector<8x32xf32>
    %128 = arith.addf %105, %127 : vector<8x32xf32>
    %c0_37 = arith.constant 0 : index
    %c0_38 = arith.constant 0 : index
    %129 = vector.load %arg15[%c0_37, %c0_38] : memref<16x32xf32, #tpu.memory_space<vmem>>, vector<8x32xf32>
    tpu.vector_store %arg15[%c0_37, %c0_38], %128 {strides = array<i32>} : memref<16x32xf32, #tpu.memory_space<vmem>>, vector<8x32xf32>,
    %130 = vector.extract_strided_slice %27 {offsets = [8, 0], sizes = [8, 32], strides = [1, 1]} : vector<16x32xf32> to vector<8x32xf32>
    %131 = vector.extract_strided_slice %32 {offsets = [8, 0], sizes = [8, 32], strides = [1, 1]} : vector<16x32xf32> to vector<8x32xf32>
    %132 = vector.extract_strided_slice %33 {offsets = [8, 0], sizes = [8, 32], strides = [1, 1]} : vector<16x32xf32> to vector<8x32xf32>
    %133 = vector.extract_strided_slice %130 {offsets = [0, 0], sizes = [8, 8], strides = [1, 1]} : vector<8x32xf32> to vector<8x8xf32>
    %134 = vector.extract_strided_slice %131 {offsets = [0, 0], sizes = [8, 8], strides = [1, 1]} : vector<8x32xf32> to vector<8x8xf32>
    %135 = tpu.transpose %134, [1, 0] : vector<8x8xf32> -> vector<8x8xf32>
    %cst_39 = arith.constant dense<0.000000e+00> : vector<8x8xf32>
    %136 = tpu.matmul %133, %135, %cst_39 {dimension_numbers = #tpu.dot_dimension_numbers<[1], [0], [0], [1], [0, 0, 1, 1], [], []>} : vector<8x8xf32>, vector<8x8xf32>, vector<8x8xf32> -> vector<8x8xf32>
    %cst_40 = arith.constant dense<0xFF800000> : vector<8xf32>
    %137 = vector.multi_reduction <maximumf>, %136, %cst_40 [1] : vector<8x8xf32> to vector<8xf32>
    %138 = vector.shape_cast %137 : vector<8xf32> to vector<8x1xf32>
    %139 = vector.broadcast %138 : vector<8x1xf32> to vector<8x8xf32>
    %140 = arith.subf %136, %139 : vector<8x8xf32>
    %141 = math.exp %140 : vector<8x8xf32>
    %cst_41 = arith.constant dense<0.000000e+00> : vector<8xf32>
    %142 = vector.multi_reduction <add>, %141, %cst_41 [1] : vector<8x8xf32> to vector<8xf32>
    %143 = vector.shape_cast %142 : vector<8xf32> to vector<8x1xf32>
    %144 = tpu.reciprocal %143 {approx = true} : vector<8x1xf32> -> vector<8x1xf32>
    %145 = vector.broadcast %144 : vector<8x1xf32> to vector<8x8xf32>
    %146 = arith.mulf %141, %145 : vector<8x8xf32>
    %c0_i32_42 = arith.constant 0 : i32
    %147 = vector.broadcast %c0_i32_42 : i32 to vector<8x32xi32>
    %148 = arith.cmpi sge, %34, %147 : vector<8x32xi32>
    %c8_i32_43 = arith.constant 8 : i32
    %149 = vector.broadcast %c8_i32_43 : i32 to vector<8x32xi32>
    %150 = arith.cmpi slt, %34, %149 : vector<8x32xi32>
    %151 = arith.andi %148, %150 : vector<8x32xi1>
    %cst_44 = arith.constant 0.000000e+00 : f32
    %152 = vector.broadcast %cst_44 : f32 to vector<8x32xf32>
    %153 = arith.select %151, %132, %152 : vector<8x32xi1>, vector<8x32xf32>
    %cst_45 = arith.constant dense<0.000000e+00> : vector<8x32xf32>
    %154 = tpu.matmul %146, %153, %cst_45 {dimension_numbers = #tpu.dot_dimension_numbers<[1], [0], [0], [1], [0, 0, 1, 1], [], []>} : vector<8x8xf32>, vector<8x32xf32>, vector<8x32xf32> -> vector<8x32xf32>
    %155 = vector.extract_strided_slice %130 {offsets = [0, 8], sizes = [8, 8], strides = [1, 1]} : vector<8x32xf32> to vector<8x8xf32>
    %156 = vector.extract_strided_slice %131 {offsets = [0, 8], sizes = [8, 8], strides = [1, 1]} : vector<8x32xf32> to vector<8x8xf32>
    %157 = tpu.transpose %156, [1, 0] : vector<8x8xf32> -> vector<8x8xf32>
    %cst_46 = arith.constant dense<0.000000e+00> : vector<8x8xf32>
    %158 = tpu.matmul %155, %157, %cst_46 {dimension_numbers = #tpu.dot_dimension_numbers<[1], [0], [0], [1], [0, 0, 1, 1], [], []>} : vector<8x8xf32>, vector<8x8xf32>, vector<8x8xf32> -> vector<8x8xf32>
    %cst_47 = arith.constant dense<0xFF800000> : vector<8xf32>
    %159 = vector.multi_reduction <maximumf>, %158, %cst_47 [1] : vector<8x8xf32> to vector<8xf32>
    %160 = vector.shape_cast %159 : vector<8xf32> to vector<8x1xf32>
    %161 = vector.broadcast %160 : vector<8x1xf32> to vector<8x8xf32>
    %162 = arith.subf %158, %161 : vector<8x8xf32>
    %163 = math.exp %162 : vector<8x8xf32>
    %cst_48 = arith.constant dense<0.000000e+00> : vector<8xf32>
    %164 = vector.multi_reduction <add>, %163, %cst_48 [1] : vector<8x8xf32> to vector<8xf32>
    %165 = vector.shape_cast %164 : vector<8xf32> to vector<8x1xf32>
    %166 = tpu.reciprocal %165 {approx = true} : vector<8x1xf32> -> vector<8x1xf32>
    %167 = vector.broadcast %166 : vector<8x1xf32> to vector<8x8xf32>
    %168 = arith.mulf %163, %167 : vector<8x8xf32>
    %c8_i32_49 = arith.constant 8 : i32
    %169 = vector.broadcast %c8_i32_49 : i32 to vector<8x32xi32>
    %170 = arith.cmpi sge, %34, %169 : vector<8x32xi32>
    %c16_i32_50 = arith.constant 16 : i32
    %171 = vector.broadcast %c16_i32_50 : i32 to vector<8x32xi32>
    %172 = arith.cmpi slt, %34, %171 : vector<8x32xi32>
    %173 = arith.andi %170, %172 : vector<8x32xi1>
    %cst_51 = arith.constant 0.000000e+00 : f32
    %174 = vector.broadcast %cst_51 : f32 to vector<8x32xf32>
    %175 = arith.select %173, %132, %174 : vector<8x32xi1>, vector<8x32xf32>
    %cst_52 = arith.constant dense<0.000000e+00> : vector<8x32xf32>
    %176 = tpu.matmul %168, %175, %cst_52 {dimension_numbers = #tpu.dot_dimension_numbers<[1], [0], [0], [1], [0, 0, 1, 1], [], []>} : vector<8x8xf32>, vector<8x32xf32>, vector<8x32xf32> -> vector<8x32xf32>
    %177 = arith.addf %154, %176 : vector<8x32xf32>
    %178 = vector.extract_strided_slice %130 {offsets = [0, 16], sizes = [8, 8], strides = [1, 1]} : vector<8x32xf32> to vector<8x8xf32>
    %179 = vector.extract_strided_slice %131 {offsets = [0, 16], sizes = [8, 8], strides = [1, 1]} : vector<8x32xf32> to vector<8x8xf32>
    %180 = tpu.transpose %179, [1, 0] : vector<8x8xf32> -> vector<8x8xf32>
    %cst_53 = arith.constant dense<0.000000e+00> : vector<8x8xf32>
    %181 = tpu.matmul %178, %180, %cst_53 {dimension_numbers = #tpu.dot_dimension_numbers<[1], [0], [0], [1], [0, 0, 1, 1], [], []>} : vector<8x8xf32>, vector<8x8xf32>, vector<8x8xf32> -> vector<8x8xf32>
    %cst_54 = arith.constant dense<0xFF800000> : vector<8xf32>
    %182 = vector.multi_reduction <maximumf>, %181, %cst_54 [1] : vector<8x8xf32> to vector<8xf32>
    %183 = vector.shape_cast %182 : vector<8xf32> to vector<8x1xf32>
    %184 = vector.broadcast %183 : vector<8x1xf32> to vector<8x8xf32>
    %185 = arith.subf %181, %184 : vector<8x8xf32>
    %186 = math.exp %185 : vector<8x8xf32>
    %cst_55 = arith.constant dense<0.000000e+00> : vector<8xf32>
    %187 = vector.multi_reduction <add>, %186, %cst_55 [1] : vector<8x8xf32> to vector<8xf32>
    %188 = vector.shape_cast %187 : vector<8xf32> to vector<8x1xf32>
    %189 = tpu.reciprocal %188 {approx = true} : vector<8x1xf32> -> vector<8x1xf32>
    %190 = vector.broadcast %189 : vector<8x1xf32> to vector<8x8xf32>
    %191 = arith.mulf %186, %190 : vector<8x8xf32>
    %c16_i32_56 = arith.constant 16 : i32
    %192 = vector.broadcast %c16_i32_56 : i32 to vector<8x32xi32>
    %193 = arith.cmpi sge, %34, %192 : vector<8x32xi32>
    %c24_i32_57 = arith.constant 24 : i32
    %194 = vector.broadcast %c24_i32_57 : i32 to vector<8x32xi32>
    %195 = arith.cmpi slt, %34, %194 : vector<8x32xi32>
    %196 = arith.andi %193, %195 : vector<8x32xi1>
    %cst_58 = arith.constant 0.000000e+00 : f32
    %197 = vector.broadcast %cst_58 : f32 to vector<8x32xf32>
    %198 = arith.select %196, %132, %197 : vector<8x32xi1>, vector<8x32xf32>
    %cst_59 = arith.constant dense<0.000000e+00> : vector<8x32xf32>
    %199 = tpu.matmul %191, %198, %cst_59 {dimension_numbers = #tpu.dot_dimension_numbers<[1], [0], [0], [1], [0, 0, 1, 1], [], []>} : vector<8x8xf32>, vector<8x32xf32>, vector<8x32xf32> -> vector<8x32xf32>
    %200 = arith.addf %177, %199 : vector<8x32xf32>
    %201 = vector.extract_strided_slice %130 {offsets = [0, 24], sizes = [8, 8], strides = [1, 1]} : vector<8x32xf32> to vector<8x8xf32>
    %202 = vector.extract_strided_slice %131 {offsets = [0, 24], sizes = [8, 8], strides = [1, 1]} : vector<8x32xf32> to vector<8x8xf32>
    %203 = tpu.transpose %202, [1, 0] : vector<8x8xf32> -> vector<8x8xf32>
    %cst_60 = arith.constant dense<0.000000e+00> : vector<8x8xf32>
    %204 = tpu.matmul %201, %203, %cst_60 {dimension_numbers = #tpu.dot_dimension_numbers<[1], [0], [0], [1], [0, 0, 1, 1], [], []>} : vector<8x8xf32>, vector<8x8xf32>, vector<8x8xf32> -> vector<8x8xf32>
    %cst_61 = arith.constant dense<0xFF800000> : vector<8xf32>
    %205 = vector.multi_reduction <maximumf>, %204, %cst_61 [1] : vector<8x8xf32> to vector<8xf32>
    %206 = vector.shape_cast %205 : vector<8xf32> to vector<8x1xf32>
    %207 = vector.broadcast %206 : vector<8x1xf32> to vector<8x8xf32>
    %208 = arith.subf %204, %207 : vector<8x8xf32>
    %209 = math.exp %208 : vector<8x8xf32>
    %cst_62 = arith.constant dense<0.000000e+00> : vector<8xf32>
    %210 = vector.multi_reduction <add>, %209, %cst_62 [1] : vector<8x8xf32> to vector<8xf32>
    %211 = vector.shape_cast %210 : vector<8xf32> to vector<8x1xf32>
    %212 = tpu.reciprocal %211 {approx = true} : vector<8x1xf32> -> vector<8x1xf32>
    %213 = vector.broadcast %212 : vector<8x1xf32> to vector<8x8xf32>
    %214 = arith.mulf %209, %213 : vector<8x8xf32>
    %c24_i32_63 = arith.constant 24 : i32
    %215 = vector.broadcast %c24_i32_63 : i32 to vector<8x32xi32>
    %216 = arith.cmpi sge, %34, %215 : vector<8x32xi32>
    %c32_i32_64 = arith.constant 32 : i32
    %217 = vector.broadcast %c32_i32_64 : i32 to vector<8x32xi32>
    %218 = arith.cmpi slt, %34, %217 : vector<8x32xi32>
    %219 = arith.andi %216, %218 : vector<8x32xi1>
    %cst_65 = arith.constant 0.000000e+00 : f32
    %220 = vector.broadcast %cst_65 : f32 to vector<8x32xf32>
    %221 = arith.select %219, %132, %220 : vector<8x32xi1>, vector<8x32xf32>
    %cst_66 = arith.constant dense<0.000000e+00> : vector<8x32xf32>
    %222 = tpu.matmul %214, %221, %cst_66 {dimension_numbers = #tpu.dot_dimension_numbers<[1], [0], [0], [1], [0, 0, 1, 1], [], []>} : vector<8x8xf32>, vector<8x32xf32>, vector<8x32xf32> -> vector<8x32xf32>
    %223 = arith.addf %200, %222 : vector<8x32xf32>
    %c8 = arith.constant 8 : index
    %c0_67 = arith.constant 0 : index
    %224 = vector.load %arg15[%c8, %c0_67] : memref<16x32xf32, #tpu.memory_space<vmem>>, vector<8x32xf32>
    tpu.vector_store %arg15[%c8, %c0_67], %223 {strides = array<i32>} : memref<16x32xf32, #tpu.memory_space<vmem>>, vector<8x32xf32>,
    %c0_68 = arith.constant 0 : index
    %c0_69 = arith.constant 0 : index
    %225 = vector.load %arg15[%c0_68, %c0_69] : memref<16x32xf32, #tpu.memory_space<vmem>>, vector<16x32xf32>
    %c0_70 = arith.constant 0 : index
    %c0_71 = arith.constant 0 : index
    %226 = vector.load %arg8[%c0_70, %c0_71] : memref<32x32xf32, #tpu.memory_space<vmem>>, vector<32x32xf32>
    %cst_72 = arith.constant dense<0.000000e+00> : vector<16x32xf32>
    %227 = tpu.matmul %225, %226, %cst_72 {dimension_numbers = #tpu.dot_dimension_numbers<[1], [0], [0], [1], [0, 0, 1, 1], [], []>} : vector<16x32xf32>, vector<32x32xf32>, vector<16x32xf32> -> vector<16x32xf32>
    %c0_73 = arith.constant 0 : index
    %c0_74 = arith.constant 0 : index
    %228 = vector.load %arg9[%c0_73, %c0_74] : memref<1x32xf32, #tpu.memory_space<vmem>>, vector<1x32xf32>
    %229 = vector.broadcast %228 : vector<1x32xf32> to vector<16x32xf32>
    %230 = arith.addf %227, %229 : vector<16x32xf32>
    %231 = arith.addf %0, %230 : vector<16x32xf32>
    %c0_75 = arith.constant 0 : index
    %c0_76 = arith.constant 0 : index
    %232 = vector.load %arg5[%c0_75, %c0_76] : memref<1x32xf32, #tpu.memory_space<vmem>>, vector<1x32xf32>
    %233 = arith.mulf %231, %231 : vector<16x32xf32>
    %cst_77 = arith.constant dense<0.000000e+00> : vector<16xf32>
    %234 = vector.multi_reduction <add>, %233, %cst_77 [1] : vector<16x32xf32> to vector<16xf32>
    %235 = vector.shape_cast %234 : vector<16xf32> to vector<16x1xf32>
    %cst_78 = arith.constant 3.200000e+01 : f32
    %236 = vector.broadcast %cst_78 : f32 to vector<16x1xf32>
    %237 = arith.divf %235, %236 : vector<16x1xf32>
    %238 = vector.broadcast %232 : vector<1x32xf32> to vector<16x32xf32>
    %239 = arith.mulf %238, %231 : vector<16x32xf32>
    %cst_79 = arith.constant 9.99999993E-9 : f32
    %240 = vector.broadcast %cst_79 : f32 to vector<16x1xf32>
    %241 = arith.addf %237, %240 : vector<16x1xf32>
    %242 = math.rsqrt %241 : vector<16x1xf32>
    %243 = vector.broadcast %242 : vector<16x1xf32> to vector<16x32xf32>
    %244 = arith.mulf %239, %243 : vector<16x32xf32>
    %c0_80 = arith.constant 0 : index
    %c0_81 = arith.constant 0 : index
    %245 = vector.load %arg10[%c0_80, %c0_81] : memref<32x128xf32, #tpu.memory_space<vmem>>, vector<32x128xf32>
    %cst_82 = arith.constant dense<0.000000e+00> : vector<16x128xf32>
    %246 = tpu.matmul %244, %245, %cst_82 {dimension_numbers = #tpu.dot_dimension_numbers<[1], [0], [0], [1], [0, 0, 1, 1], [], []>} : vector<16x32xf32>, vector<32x128xf32>, vector<16x128xf32> -> vector<16x128xf32>
    %c0_83 = arith.constant 0 : index
    %c0_84 = arith.constant 0 : index
    %247 = vector.load %arg11[%c0_83, %c0_84] : memref<1x128xf32, #tpu.memory_space<vmem>>, vector<1x128xf32>
    %248 = vector.broadcast %247 : vector<1x128xf32> to vector<16x128xf32>
    %249 = arith.addf %246, %248 : vector<16x128xf32>
    %250 = vector.extract_strided_slice %249 {offsets = [0, 0], sizes = [16, 64], strides = [1, 1]} : vector<16x128xf32> to vector<16x64xf32>
    %251 = vector.extract_strided_slice %249 {offsets = [0, 64], sizes = [16, 64], strides = [1, 1]} : vector<16x128xf32> to vector<16x64xf32>
    %252 = arith.negf %250 : vector<16x64xf32>
    %253 = math.exp %252 : vector<16x64xf32>
    %cst_85 = arith.constant 1.000000e+00 : f32
    %254 = vector.broadcast %cst_85 : f32 to vector<16x64xf32>
    %255 = arith.addf %254, %253 : vector<16x64xf32>
    %256 = arith.divf %254, %255 : vector<16x64xf32>
    %257 = arith.mulf %250, %256 : vector<16x64xf32>
    %258 = arith.mulf %257, %251 : vector<16x64xf32>
    %c0_86 = arith.constant 0 : index
    %c0_87 = arith.constant 0 : index
    %259 = vector.load %arg12[%c0_86, %c0_87] : memref<64x32xf32, #tpu.memory_space<vmem>>, vector<64x32xf32>
    %cst_88 = arith.constant dense<0.000000e+00> : vector<16x32xf32>
    %260 = tpu.matmul %258, %259, %cst_88 {dimension_numbers = #tpu.dot_dimension_numbers<[1], [0], [0], [1], [0, 0, 1, 1], [], []>} : vector<16x64xf32>, vector<64x32xf32>, vector<16x32xf32> -> vector<16x32xf32>
    %c0_89 = arith.constant 0 : index
    %c0_90 = arith.constant 0 : index
    %261 = vector.load %arg13[%c0_89, %c0_90] : memref<1x32xf32, #tpu.memory_space<vmem>>, vector<1x32xf32>
    %262 = vector.broadcast %261 : vector<1x32xf32> to vector<16x32xf32>
    %263 = arith.addf %260, %262 : vector<16x32xf32>
    %264 = arith.addf %231, %263 : vector<16x32xf32>
    %c0_91 = arith.constant 0 : index
    %c0_92 = arith.constant 0 : index
    %265 = vector.load %arg14[%c0_91, %c0_92] : memref<16x32xf32, #tpu.memory_space<vmem>>, vector<16x32xf32>
    tpu.vector_store %arg14[%c0_91, %c0_92], %264 {strides = array<i32>} : memref<16x32xf32, #tpu.memory_space<vmem>>, vector<16x32xf32>,
    return
  }
  func.func @transform_0(%arg0: i32) -> (i32, i32) {
    %c0_i32 = arith.constant 0 : i32
    %c0_i32_0 = arith.constant 0 : i32
    return %arg0, %c0_i32 : i32, i32
  }
  func.func @transform_1(%arg0: i32) -> (i32, i32) {
    %c0_i32 = arith.constant 0 : i32
    %c0_i32_0 = arith.constant 0 : i32
    return %arg0, %c0_i32 : i32, i32
  }
  func.func @transform_2(%arg0: i32) -> (i32, i32) {
    %c0_i32 = arith.constant 0 : i32
    %c0_i32_0 = arith.constant 0 : i32
    return %arg0, %c0_i32 : i32, i32
  }
  func.func @transform_3(%arg0: i32) -> (i32, i32) {
    %c0_i32 = arith.constant 0 : i32
    %c0_i32_0 = arith.constant 0 : i32
    %c0_i32_1 = arith.constant 0 : i32
    return %c0_i32, %c0_i32_0 : i32, i32
  }
  func.func @transform_4(%arg0: i32) -> (i32, i32) {
    %c0_i32 = arith.constant 0 : i32
    %c0_i32_0 = arith.constant 0 : i32
    %c0_i32_1 = arith.constant 0 : i32
    return %c0_i32, %c0_i32_0 : i32, i32
  }
  func.func @transform_5(%arg0: i32) -> (i32, i32) {
    %c0_i32 = arith.constant 0 : i32
    %c0_i32_0 = arith.constant 0 : i32
    %c0_i32_1 = arith.constant 0 : i32
    return %c0_i32, %c0_i32_0 : i32, i32
  }
  func.func @transform_6(%arg0: i32) -> (i32, i32) {
    %c0_i32 = arith.constant 0 : i32
    %c0_i32_0 = arith.constant 0 : i32
    %c0_i32_1 = arith.constant 0 : i32
    return %c0_i32, %c0_i32_0 : i32, i32
  }
  func.func @transform_7(%arg0: i32) -> (i32, i32) {
    %c0_i32 = arith.constant 0 : i32
    %c0_i32_0 = arith.constant 0 : i32
    %c0_i32_1 = arith.constant 0 : i32
    return %c0_i32, %c0_i32_0 : i32, i32
  }
  func.func @transform_8(%arg0: i32) -> (i32, i32) {
    %c0_i32 = arith.constant 0 : i32
    %c0_i32_0 = arith.constant 0 : i32
    %c0_i32_1 = arith.constant 0 : i32
    return %c0_i32, %c0_i32_0 : i32, i32
  }
  func.func @transform_9(%arg0: i32) -> (i32, i32) {
    %c0_i32 = arith.constant 0 : i32
    %c0_i32_0 = arith.constant 0 : i32
    %c0_i32_1 = arith.constant 0 : i32
    return %c0_i32, %c0_i32_0 : i32, i32
  }
  func.func @transform_10(%arg0: i32) -> (i32, i32) {
    %c0_i32 = arith.constant 0 : i32
    %c0_i32_0 = arith.constant 0 : i32
    %c0_i32_1 = arith.constant 0 : i32
    return %c0_i32, %c0_i32_0 : i32, i32
  }
  func.func @transform_11(%arg0: i32) -> (i32, i32) {
    %c0_i32 = arith.constant 0 : i32
    %c0_i32_0 = arith.constant 0 : i32
    %c0_i32_1 = arith.constant 0 : i32
    return %c0_i32, %c0_i32_0 : i32, i32
  }
  func.func @transform_12(%arg0: i32) -> (i32, i32) {
    %c0_i32 = arith.constant 0 : i32
    %c0_i32_0 = arith.constant 0 : i32
    %c0_i32_1 = arith.constant 0 : i32
    return %c0_i32, %c0_i32_0 : i32, i32
  }
  func.func @transform_13(%arg0: i32) -> (i32, i32) {
    %c0_i32 = arith.constant 0 : i32
    %c0_i32_0 = arith.constant 0 : i32
    return %arg0, %c0_i32 : i32, i32
  }
}

</mosaic_0001>

<llo_original>
// kernel: tpu_custom_call.1
$region0: #{tpu_custom_call.1}
  #allocation0 [shape = 'u32[]', space=smem, size = 0x4, offset = 0x4, fixed_abs, tag = 'smem constant byte address 0x4 - core index']
  #allocation1 [shape = 'u32[72,128]{1,0:T(1,128)}', space=vmem, size = 0x9000, scoped, tag = 'internal scratch']
  #allocation2 [shape = 'f32[16,32]{1,0:T(8,128)}', space=vmem, size = 0x2000, scoped, tag = 'scratch operand']
  %s0 = inlined_call_operand.vmem [shape: f32[16,32], index: 0, kind: input, shape index: {}]
  %s1 = inlined_call_operand.vmem [shape: f32[16,8], index: 1, kind: input, shape index: {}]
  %s2 = inlined_call_operand.vmem [shape: f32[16,8], index: 2, kind: input, shape index: {}]
  %s3 = inlined_call_operand.vmem [shape: f32[1,32], index: 3, kind: input, shape index: {}]
  %s4 = inlined_call_operand.vmem [shape: f32[1,32], index: 4, kind: input, shape index: {}]
  %s5 = inlined_call_operand.vmem [shape: f32[32,160], index: 5, kind: input, shape index: {}]
  %s6 = inlined_call_operand.vmem [shape: f32[1,160], index: 6, kind: input, shape index: {}]
  %s7 = inlined_call_operand.vmem [shape: f32[32,32], index: 7, kind: input, shape index: {}]
  %s8 = inlined_call_operand.vmem [shape: f32[1,32], index: 8, kind: input, shape index: {}]
  %s9 = inlined_call_operand.hbm [shape: f32[32,128], index: 9, kind: input, shape index: {}]
  %s10 = inlined_call_operand.vmem [shape: f32[1,128], index: 10, kind: input, shape index: {}]
  %s11 = inlined_call_operand.vmem [shape: f32[64,32], index: 11, kind: input, shape index: {}]
  %s12 = inlined_call_operand.vmem [shape: f32[1,32], index: 12, kind: input, shape index: {}]
  %s13 = inlined_call_operand.hbm [shape: f32[16,32], index: 13, kind: output, shape index: {}]
  %s14 = sld [smem:[#allocation0]]
  $region66: #{tpu_custom_call.1} parent=0
    _
  %s16 = ssub.s32 1, %s14
  %s17 = scalar_select 0, %s16, %s14
  $region1: #{tpu_custom_call.1} parent=0
    #allocation3 [shape = 'u8[16384]{0}', space=vmem, size = 0x4000, scoped, tag = 'input window, operand 9, single buffered']
    #allocation4 [shape = 's32[1]{0}', space=sflag, size = 0x4, scoped, tag = 'scoped memory for tpu_custom_call.1']
    #allocation5 [shape = 's32[1]{0}', space=sflag, size = 0x4, scoped, tag = 'scoped memory for tpu_custom_call.1']
    #allocation6 [shape = 'u8[8192]{0}', space=vmem, size = 0x2000, scoped, tag = 'output window, operand 0, single buffered']
    %18 = vsyncpa [#allocation4], 0
    %19 = vsyncpa [#allocation5], 0
    // Predicated region
    $region2: #{tpu_custom_call.1} parent=1 // pred_check
      _
    $region3: #{tpu_custom_call.1} parent=1 // pred_check_branch
      %21 = sbr.rel (0) target = $region5
    $region4: #{tpu_custom_call.1} parent=1 // pred_region
      _
    $region5: #{tpu_custom_call.1} parent=1 // pred_fallthru
      _
    // Predicated region
    $region6: #{tpu_custom_call.1} parent=1 // pred_check
      _
    $region7: #{tpu_custom_call.1} parent=1 // pred_check_branch
      %23 = sbr.rel (0) target = $region9
    $region8: #{tpu_custom_call.1} parent=1 // pred_region
      _
    $region9: #{tpu_custom_call.1} parent=1 // pred_fallthru
      _
    // Predicated region
    $region10: #{tpu_custom_call.1} parent=1 // pred_check
      _
    $region11: #{tpu_custom_call.1} parent=1 // pred_check_branch
      %25 = sbr.rel (0) target = $region13
    $region12: #{tpu_custom_call.1} parent=1 // pred_region
      _
    $region13: #{tpu_custom_call.1} parent=1 // pred_fallthru
      _
    // Predicated region
    $region14: #{tpu_custom_call.1} parent=1 // pred_check
      _
    $region15: #{tpu_custom_call.1} parent=1 // pred_check_branch
      %27 = sbr.rel (0) target = $region17
    $region16: #{tpu_custom_call.1} parent=1 // pred_region
      _
    $region17: #{tpu_custom_call.1} parent=1 // pred_fallthru
      _
    // Predicated region
    $region18: #{tpu_custom_call.1} parent=1 // pred_check
      _
    $region19: #{tpu_custom_call.1} parent=1 // pred_check_branch
      %29 = sbr.rel (0) target = $region21
    $region20: #{tpu_custom_call.1} parent=1 // pred_region
      _
    $region21: #{tpu_custom_call.1} parent=1 // pred_fallthru
      _
    // Predicated region
    $region22: #{tpu_custom_call.1} parent=1 // pred_check
      _
    $region23: #{tpu_custom_call.1} parent=1 // pred_check_branch
      %31 = sbr.rel (0) target = $region25
    $region24: #{tpu_custom_call.1} parent=1 // pred_region
      _
    $region25: #{tpu_custom_call.1} parent=1 // pred_fallthru
      _
    // Predicated region
    $region26: #{tpu_custom_call.1} parent=1 // pred_check
      _
    $region27: #{tpu_custom_call.1} parent=1 // pred_check_branch
      %33 = sbr.rel (0) target = $region29
    $region28: #{tpu_custom_call.1} parent=1 // pred_region
      _
    $region29: #{tpu_custom_call.1} parent=1 // pred_fallthru
      _
    // Predicated region
    $region30: #{tpu_custom_call.1} parent=1 // pred_check
      _
    $region31: #{tpu_custom_call.1} parent=1 // pred_check_branch
      %35 = sbr.rel (0) target = $region33
    $region32: #{tpu_custom_call.1} parent=1 // pred_region
      _
    $region33: #{tpu_custom_call.1} parent=1 // pred_fallthru
      _
    // Predicated region
    $region34: #{tpu_custom_call.1} parent=1 // pred_check
      _
    $region35: #{tpu_custom_call.1} parent=1 // pred_check_branch
      %37 = sbr.rel (0) target = $region37
    $region36: #{tpu_custom_call.1} parent=1 // pred_region
      _
    $region37: #{tpu_custom_call.1} parent=1 // pred_fallthru
      _
    // Predicated region
    $region38: #{tpu_custom_call.1} parent=1 // pred_check
      _
    $region39: #{tpu_custom_call.1} parent=1 // pred_check_branch
      %39 = sbr.rel (0) target = $region41
    $region40: #{tpu_custom_call.1} parent=1 // pred_region
      %41 = vsyncadd [#allocation4], 0
      %s42 = sshll.u32 %s9, 4
      %s43 = int_to_ptr.hbm [resolvable:$true] %s42
      %s44 = sshll.u32 [#allocation3], 4
      %s45 = int_to_ptr.vmem [resolvable:$true] %s44
      %50 = dma.hbm_to_vmem [thread:$0]  %s43, 512, %s45, [#allocation4], 128, 128, 8
    $region41: #{tpu_custom_call.1} parent=1 // pred_fallthru
      _
    // Predicated region
    $region42: #{tpu_custom_call.1} parent=1 // pred_check
      _
    $region43: #{tpu_custom_call.1} parent=1 // pred_check_branch
      %52 = sbr.rel (0) target = $region45
    $region44: #{tpu_custom_call.1} parent=1 // pred_region
      _
    $region45: #{tpu_custom_call.1} parent=1 // pred_fallthru
      _
    // Predicated region
    $region46: #{tpu_custom_call.1} parent=1 // pred_check
      _
    $region47: #{tpu_custom_call.1} parent=1 // pred_check_branch
      %54 = sbr.rel (0) target = $region49
    $region48: #{tpu_custom_call.1} parent=1 // pred_region
      _
    $region49: #{tpu_custom_call.1} parent=1 // pred_fallthru
      _
    // Predicated region
    $region50: #{tpu_custom_call.1} parent=1 // pred_check
      _
    $region51: #{tpu_custom_call.1} parent=1 // pred_check_branch
      %56 = sbr.rel (0) target = $region53
    $region52: #{tpu_custom_call.1} parent=1 // pred_region
      _
    $region53: #{tpu_custom_call.1} parent=1 // pred_fallthru
      _
    // Predicated region
    $region54: #{tpu_custom_call.1} parent=1 // pred_check
      _
    $region55: #{tpu_custom_call.1} parent=1 // pred_check_branch
      %58 = sbr.rel (0) target = $region57
    $region56: #{tpu_custom_call.1} parent=1 // pred_region
      %60 = dma.done [#allocation4], 512
    $region57: #{tpu_custom_call.1} parent=1 // pred_fallthru
      _
    %v61 = vld [vmem:[%s0] sm:$0xff]
    %v62 = vld [vmem:[%s0 + $0x8] sm:$0xff]
    %v63 = vld [vmem:[%s1] sm:$0xff]
    %v64 = vld [vmem:[%s1 + $0x8] sm:$0xff]
    %67 = vrot.lane.b32.xlu0 %v63, 8
    %v68 = vpop.permute.xlu0 %67
    %69 = vrot.lane.b32.xlu0 %v64, 8
    %v70 = vpop.permute.xlu0 %69
    %73 = vrot.lane.b32.xlu0 %v63, 16
    %v74 = vpop.permute.xlu0 %73
    %75 = vrot.lane.b32.xlu0 %v64, 16
    %v76 = vpop.permute.xlu0 %75
    %79 = vrot.lane.b32.xlu0 %v63, 24
    %v80 = vpop.permute.xlu0 %79
    %81 = vrot.lane.b32.xlu0 %v64, 24
    %v82 = vpop.permute.xlu0 %81
    %vm85 = vcmask 64512
    %v86 = vsel %vm85, %v63, %v68
    %v87 = vsel %vm85, %v64, %v70
    %vm88 = vcmask 130048
    %v89 = vsel %vm88, %v86, %v74
    %v90 = vsel %vm88, %v87, %v76
    %vm91 = vcmask 195584
    %v92 = vsel %vm91, %v89, %v80
    %v93 = vsel %vm91, %v90, %v82
    %v94 = vld [vmem:[%s2] sm:$0xff]
    %v95 = vld [vmem:[%s2 + $0x8] sm:$0xff]
    %98 = vrot.lane.b32.xlu0 %v94, 8
    %v99 = vpop.permute.xlu0 %98
    %100 = vrot.lane.b32.xlu0 %v95, 8
    %v101 = vpop.permute.xlu0 %100
    %104 = vrot.lane.b32.xlu0 %v94, 16
    %v105 = vpop.permute.xlu0 %104
    %106 = vrot.lane.b32.xlu0 %v95, 16
    %v107 = vpop.permute.xlu0 %106
    %110 = vrot.lane.b32.xlu0 %v94, 24
    %v111 = vpop.permute.xlu0 %110
    %112 = vrot.lane.b32.xlu0 %v95, 24
    %v113 = vpop.permute.xlu0 %112
    %v116 = vsel %vm85, %v94, %v99
    %v117 = vsel %vm85, %v95, %v101
    %v118 = vsel %vm88, %v116, %v105
    %v119 = vsel %vm88, %v117, %v107
    %v120 = vsel %vm91, %v118, %v111
    %v121 = vsel %vm91, %v119, %v113
    %v122 = vld [vmem:[%s3] sm:$0x1]
    %v123 = vmul.f32 %v61, %v61
    %v124 = vmul.f32 %v62, %v62
    %vm125 = vcmask 261120
    %v126 = vsel %vm125, %v123, 0.0
    %127 = vadd.xlane.f32.xlu0 %v126
    %v128 = vpop.xlane.xlu0 %127
    %v129 = vsel %vm125, %v124, 0.0
    %130 = vadd.xlane.f32.xlu0 %v129
    %v131 = vpop.xlane.xlu0 %130
    %v132 = vrcp.pop 32.0
    %v133 = vmul.f32 32.0, %v132
    %v134 = vsub.f32 1.0, %v133
    %v135 = vmul.f32 %v132, %v134
    %v136 = vadd.f32 %v132, %v135
    %vm137 = vweird.f32 %v132
    %v138 = vsel %vm137, %v132, %v136
    %v139 = vmul.f32 %v128, %v138
    %v140 = vmul.f32 %v131, %v138
    %v142 = vperm.slane %v122, 0
    %v144 = vmul.f32 %v142, %v61
    %v145 = vmul.f32 %v142, %v62
    %v146 = vadd.f32 %v139, 1e-08
    %v147 = vadd.f32 %v140, 1e-08
    %v148 = vrsqrt.pop %v146
    %v149 = vmul.f32 %v148, %v146
    %v150 = vmul.f32 %v149, %v148
    %v151 = vmul.f32 0.5, %v150
    %v152 = vsub.f32 1.5, %v151
    %v153 = vmul.f32 %v148, %v152
    %vm154 = vweird.f32 %v146
    %vm155 = vweird.f32 %v148
    %vm156 = vmor %vm154, %vm155
    %v157 = vsel %vm156, %v148, %v153
    %v158 = vrsqrt.pop %v147
    %v159 = vmul.f32 %v158, %v147
    %v160 = vmul.f32 %v159, %v158
    %v161 = vmul.f32 0.5, %v160
    %v162 = vsub.f32 1.5, %v161
    %v163 = vmul.f32 %v158, %v162
    %vm164 = vweird.f32 %v147
    %vm165 = vweird.f32 %v158
    %vm166 = vmor %vm164, %vm165
    %v167 = vsel %vm166, %v158, %v163
    %v168 = vmul.f32 %v144, %v157
    %v169 = vmul.f32 %v145, %v167
    %v170 = vld [vmem:[%s5] sm:$0xff]
    %v171 = vld [vmem:[%s5 + $0x8] sm:$0xff]
    %v172 = vld [vmem:[%s5 + $0x10] sm:$0xff]
    %v173 = vld [vmem:[%s5 + $0x18] sm:$0xff]
    %v174 = vld [vmem:[%s5 + $0x20] sm:$0xff]
    %v175 = vld [vmem:[%s5 + $0x28] sm:$0xff]
    %v176 = vld [vmem:[%s5 + $0x30] sm:$0xff]
    %v177 = vld [vmem:[%s5 + $0x38] sm:$0xff]
    %v178 = vld [vmem:[%s6] sm:$0x3]
    %v180 = vperm.slane %v178, 0
    %v181 = vperm.slane %v178, 1
    %v185 = vsel %vm125, %v168, 0
    %v188 = vsel %vm125, %v169, 0
    %190 = vmatpush.msra.mxu0 0.0
    %191 = vmatpush.msra.mxu0 0.0
    %192 = vmatpush.msra.mxu0 0.0
    %193 = vmatpush.msra.mxu0 0.0
    %194 = vmatpush.msra.mxu0 0.0
    %195 = vmatpush.msra.mxu0 0.0
    %196 = vmatpush.msra.mxu0 0.0
    %197 = vmatpush.msra.mxu0 0.0
    %198 = vmatpush.msra.mxu0 0.0
    %199 = vmatpush.msra.mxu0 0.0
    %200 = vmatpush.msra.mxu0 0.0
    %201 = vmatpush.msra.mxu0 0.0
    %202 = vmatpush.msra.mxu0 %v176
    %203 = vmatpush.msra.mxu0 %v174
    %204 = vmatpush.msra.mxu0 %v172
    %205 = vmatpush.msra.mxu0 %v170
    %206 = vmatmul.f32.gmra.mxu0 %v185
    %v207 = vpop.f32.mrf.mxu0
    %v208 = vadd.f32 %v180, %v207
    %209 = vmatmul.f32.gmra.mxu0 %v188
    %v210 = vpop.f32.mrf.mxu0
    %v211 = vadd.f32 %v180, %v210
    %212 = vdwg.mxu0
    %213 = vmatpush.msra.mxu0 0.0
    %214 = vmatpush.msra.mxu0 0.0
    %215 = vmatpush.msra.mxu0 0.0
    %216 = vmatpush.msra.mxu0 0.0
    %217 = vmatpush.msra.mxu0 0.0
    %218 = vmatpush.msra.mxu0 0.0
    %219 = vmatpush.msra.mxu0 0.0
    %220 = vmatpush.msra.mxu0 0.0
    %221 = vmatpush.msra.mxu0 0.0
    %222 = vmatpush.msra.mxu0 0.0
    %223 = vmatpush.msra.mxu0 0.0
    %224 = vmatpush.msra.mxu0 0.0
    %225 = vmatpush.msra.mxu0 %v177
    %226 = vmatpush.msra.mxu0 %v175
    %227 = vmatpush.msra.mxu0 %v173
    %228 = vmatpush.msra.mxu0 %v171
    %229 = vmatmul.f32.gmra.mxu0 %v185
    %v230 = vpop.f32.mrf.mxu0
    %v231 = vadd.f32 %v181, %v230
    %232 = vmatmul.f32.gmra.mxu0 %v188
    %v233 = vpop.f32.mrf.mxu0
    %v234 = vadd.f32 %v181, %v233
    %235 = vdwg.mxu0
    %v236 = vmul.f32 %v208, %v92
    %v237 = vmul.f32 %v211, %v93
    %240 = vrot.lane.b32.xlu0 %v120, 32
    %v241 = vpop.permute.xlu0 %240
    %242 = vrot.lane.b32.xlu0 %v121, 32
    %v243 = vpop.permute.xlu0 %242
    %v246 = vmul.f32 %v208, %v241
    %v247 = vmul.f32 %v211, %v243
    %250 = vrot.lane.b32.xlu0 %v246, 96
    %v251 = vpop.permute.xlu0 %250
    %252 = vrot.lane.b32.xlu0 %v247, 96
    %v253 = vpop.permute.xlu0 %252
    %v256 = vadd.f32 %v236, %v251
    %v257 = vadd.f32 %v237, %v253
    %260 = vrot.lane.b32.xlu0 %v92, 64
    %v261 = vpop.permute.xlu0 %260
    %262 = vrot.lane.b32.xlu0 %v93, 64
    %v263 = vpop.permute.xlu0 %262
    %v266 = vmul.f32 %v208, %v261
    %v267 = vmul.f32 %v211, %v263
    %268 = vrot.lane.b32.xlu0 %v120, 96
    %v269 = vpop.permute.xlu0 %268
    %270 = vrot.lane.b32.xlu0 %v121, 96
    %v271 = vpop.permute.xlu0 %270
    %v274 = vmul.f32 %v208, %v269
    %v275 = vmul.f32 %v211, %v271
    %278 = vrot.lane.b32.xlu0 %v274, 96
    %v279 = vpop.permute.xlu0 %278
    %280 = vrot.lane.b32.xlu0 %v275, 96
    %v281 = vpop.permute.xlu0 %280
    %v284 = vadd.f32 %v266, %v279
    %v285 = vadd.f32 %v267, %v281
    %v286 = vlaneseq
    %v287 = vand.u32 %v286, 127
    %289 = vrot.lane.b32.xlu0 %v284, 64
    %v290 = vpop.permute.xlu0 %289
    %v292 = vsel %vm85, %v256, 0
    %v294 = vsel %vm85, %v290, 0
    %296 = vmatpush.xpose.msra.mxu0 0.0
    %297 = vmatpush.xpose.msra.mxu0 0.0
    %298 = vmatpush.xpose.msra.mxu0 0.0
    %299 = vmatpush.xpose.msra.mxu0 0.0
    %300 = vmatpush.xpose.msra.mxu0 0.0
    %301 = vmatpush.xpose.msra.mxu0 0.0
    %302 = vmatpush.xpose.msra.mxu0 0.0
    %303 = vmatpush.xpose.msra.mxu0 0.0
    %304 = vmatpush.xpose.msra.mxu0 0.0
    %305 = vmatpush.xpose.msra.mxu0 0.0
    %306 = vmatpush.xpose.msra.mxu0 0.0
    %307 = vmatpush.xpose.msra.mxu0 0.0
    %308 = vmatpush.xpose.msra.mxu0 0.0
    %309 = vmatpush.xpose.msra.mxu0 0.0
    %310 = vmatpush.xpose.msra.mxu0 0.0
    %311 = vmatpush.xpose.msra.mxu0 %v294
    %312 = vmatmul.f32.gmra.mxu0 %v292
    %v313 = vpop.f32.mrf.mxu0
    %v314 = vadd.f32 0.0, %v313
    %315 = vdwg.mxu0
    %v316 = vsel %vm85, %v314, -inf
    %317 = vmax.xlane.f32.xlu0 %v316
    %v318 = vpop.xlane.xlu0 %317
    %v319 = vsub.f32 %v314, %v318
    %v320 = vmul.f32 %v319, 1.442695
    %v321 = vpow.pop %v320
    %v322 = vsel %vm85, %v321, 0.0
    %323 = vadd.xlane.f32.xlu0 %v322
    %v324 = vpop.xlane.xlu0 %323
    %v325 = vrcp.pop %v324
    %v326 = vmul.f32 %v321, %v325
    %vm327 = vcmp.ge.s32.totalorder %v287, 0
    %vm328 = vcmp.lt.s32.totalorder %v287, 8
    %vm329 = vmand %vm327, %vm328
    %v330 = vsel %vm329, %v231, 0.0
    %331 = vrot.lane.b32.xlu0 %v256, 120
    %v332 = vpop.permute.xlu0 %331
    %333 = vrot.lane.b32.xlu0 %v284, 56
    %v334 = vpop.permute.xlu0 %333
    %v335 = vsel %vm85, %v332, 0
    %v337 = vsel %vm85, %v334, 0
    %339 = vmatpush.xpose.msra.mxu0 0.0
    %340 = vmatpush.xpose.msra.mxu0 0.0
    %341 = vmatpush.xpose.msra.mxu0 0.0
    %342 = vmatpush.xpose.msra.mxu0 0.0
    %343 = vmatpush.xpose.msra.mxu0 0.0
    %344 = vmatpush.xpose.msra.mxu0 0.0
    %345 = vmatpush.xpose.msra.mxu0 0.0
    %346 = vmatpush.xpose.msra.mxu0 0.0
    %347 = vmatpush.xpose.msra.mxu0 0.0
    %348 = vmatpush.xpose.msra.mxu0 0.0
    %349 = vmatpush.xpose.msra.mxu0 0.0
    %350 = vmatpush.xpose.msra.mxu0 0.0
    %351 = vmatpush.xpose.msra.mxu0 0.0
    %352 = vmatpush.xpose.msra.mxu0 0.0
    %353 = vmatpush.xpose.msra.mxu0 0.0
    %354 = vmatpush.xpose.msra.mxu0 %v337
    %355 = vmatmul.f32.gmra.mxu0 %v335
    %v356 = vpop.f32.mrf.mxu0
    %v357 = vadd.f32 0.0, %v356
    %358 = vdwg.mxu0
    %v359 = vsel %vm85, %v357, -inf
    %360 = vmax.xlane.f32.xlu0 %v359
    %v361 = vpop.xlane.xlu0 %360
    %v362 = vsub.f32 %v357, %v361
    %v363 = vmul.f32 %v362, 1.442695
    %v364 = vpow.pop %v363
    %v365 = vsel %vm85, %v364, 0.0
    %366 = vadd.xlane.f32.xlu0 %v365
    %v367 = vpop.xlane.xlu0 %366
    %v368 = vrcp.pop %v367
    %v369 = vmul.f32 %v364, %v368
    %vm370 = vcmp.ge.s32.totalorder %v287, 8
    %vm371 = vcmp.lt.s32.totalorder %v287, 16
    %vm372 = vmand %vm370, %vm371
    %v373 = vsel %vm372, %v231, 0.0
    %v375 = vsel %vm85, %v369, 0
    %377 = vmatpush.msra.mxu0 0.0
    %378 = vmatpush.msra.mxu0 0.0
    %379 = vmatpush.msra.mxu0 0.0
    %380 = vmatpush.msra.mxu0 0.0
    %381 = vmatpush.msra.mxu0 0.0
    %382 = vmatpush.msra.mxu0 0.0
    %383 = vmatpush.msra.mxu0 0.0
    %384 = vmatpush.msra.mxu0 0.0
    %385 = vmatpush.msra.mxu0 0.0
    %386 = vmatpush.msra.mxu0 0.0
    %387 = vmatpush.msra.mxu0 0.0
    %388 = vmatpush.msra.mxu0 0.0
    %389 = vmatpush.msra.mxu0 0.0
    %390 = vmatpush.msra.mxu0 0.0
    %391 = vmatpush.msra.mxu0 0.0
    %392 = vmatpush.msra.mxu0 %v373
    %393 = vmatmul.f32.gmra.mxu0 %v375
    %v394 = vpop.f32.mrf.mxu0
    %v395 = vadd.f32 0.0, %v394
    %396 = vdwg.mxu0
    %v398 = vsel %vm85, %v326, 0
    %400 = vmatpush.msra.mxu0 0.0
    %401 = vmatpush.msra.mxu0 0.0
    %402 = vmatpush.msra.mxu0 0.0
    %403 = vmatpush.msra.mxu0 0.0
    %404 = vmatpush.msra.mxu0 0.0
    %405 = vmatpush.msra.mxu0 0.0
    %406 = vmatpush.msra.mxu0 0.0
    %407 = vmatpush.msra.mxu0 0.0
    %408 = vmatpush.msra.mxu0 0.0
    %409 = vmatpush.msra.mxu0 0.0
    %410 = vmatpush.msra.mxu0 0.0
    %411 = vmatpush.msra.mxu0 0.0
    %412 = vmatpush.msra.mxu0 0.0
    %413 = vmatpush.msra.mxu0 0.0
    %414 = vmatpush.msra.mxu0 0.0
    %415 = vmatpush.msra.mxu0 %v330
    %416 = vmatmul.f32.gmra.mxu0 %v398
    %v417 = vpop.f32.mrf.mxu0
    %v418 = vadd.f32 %v395, %v417
    %419 = vdwg.mxu0
    %420 = vrot.lane.b32.xlu0 %v256, 112
    %v421 = vpop.permute.xlu0 %420
    %422 = vrot.lane.b32.xlu0 %v284, 48
    %v423 = vpop.permute.xlu0 %422
    %v424 = vsel %vm85, %v421, 0
    %v426 = vsel %vm85, %v423, 0
    %428 = vmatpush.xpose.msra.mxu0 0.0
    %429 = vmatpush.xpose.msra.mxu0 0.0
    %430 = vmatpush.xpose.msra.mxu0 0.0
    %431 = vmatpush.xpose.msra.mxu0 0.0
    %432 = vmatpush.xpose.msra.mxu0 0.0
    %433 = vmatpush.xpose.msra.mxu0 0.0
    %434 = vmatpush.xpose.msra.mxu0 0.0
    %435 = vmatpush.xpose.msra.mxu0 0.0
    %436 = vmatpush.xpose.msra.mxu0 0.0
    %437 = vmatpush.xpose.msra.mxu0 0.0
    %438 = vmatpush.xpose.msra.mxu0 0.0
    %439 = vmatpush.xpose.msra.mxu0 0.0
    %440 = vmatpush.xpose.msra.mxu0 0.0
    %441 = vmatpush.xpose.msra.mxu0 0.0
    %442 = vmatpush.xpose.msra.mxu0 0.0
    %443 = vmatpush.xpose.msra.mxu0 %v426
    %444 = vmatmul.f32.gmra.mxu0 %v424
    %v445 = vpop.f32.mrf.mxu0
    %v446 = vadd.f32 0.0, %v445
    %447 = vdwg.mxu0
    %v448 = vsel %vm85, %v446, -inf
    %449 = vmax.xlane.f32.xlu0 %v448
    %v450 = vpop.xlane.xlu0 %449
    %v451 = vsub.f32 %v446, %v450
    %v452 = vmul.f32 %v451, 1.442695
    %v453 = vpow.pop %v452
    %v454 = vsel %vm85, %v453, 0.0
    %455 = vadd.xlane.f32.xlu0 %v454
    %v456 = vpop.xlane.xlu0 %455
    %v457 = vrcp.pop %v456
    %v458 = vmul.f32 %v453, %v457
    %vm459 = vcmp.ge.s32.totalorder %v287, 16
    %vm460 = vcmp.lt.s32.totalorder %v287, 24
    %vm461 = vmand %vm459, %vm460
    %v462 = vsel %vm461, %v231, 0.0
    %v464 = vsel %vm85, %v458, 0
    %466 = vmatpush.msra.mxu0 0.0
    %467 = vmatpush.msra.mxu0 0.0
    %468 = vmatpush.msra.mxu0 0.0
    %469 = vmatpush.msra.mxu0 0.0
    %470 = vmatpush.msra.mxu0 0.0
    %471 = vmatpush.msra.mxu0 0.0
    %472 = vmatpush.msra.mxu0 0.0
    %473 = vmatpush.msra.mxu0 0.0
    %474 = vmatpush.msra.mxu0 0.0
    %475 = vmatpush.msra.mxu0 0.0
    %476 = vmatpush.msra.mxu0 0.0
    %477 = vmatpush.msra.mxu0 0.0
    %478 = vmatpush.msra.mxu0 0.0
    %479 = vmatpush.msra.mxu0 0.0
    %480 = vmatpush.msra.mxu0 0.0
    %481 = vmatpush.msra.mxu0 %v462
    %482 = vmatmul.f32.gmra.mxu0 %v464
    %v483 = vpop.f32.mrf.mxu0
    %v484 = vadd.f32 0.0, %v483
    %485 = vdwg.mxu0
    %v486 = vadd.f32 %v418, %v484
    %487 = vrot.lane.b32.xlu0 %v256, 104
    %v488 = vpop.permute.xlu0 %487
    %489 = vrot.lane.b32.xlu0 %v284, 40
    %v490 = vpop.permute.xlu0 %489
    %v491 = vsel %vm85, %v488, 0
    %v493 = vsel %vm85, %v490, 0
    %495 = vmatpush.xpose.msra.mxu0 0.0
    %496 = vmatpush.xpose.msra.mxu0 0.0
    %497 = vmatpush.xpose.msra.mxu0 0.0
    %498 = vmatpush.xpose.msra.mxu0 0.0
    %499 = vmatpush.xpose.msra.mxu0 0.0
    %500 = vmatpush.xpose.msra.mxu0 0.0
    %501 = vmatpush.xpose.msra.mxu0 0.0
    %502 = vmatpush.xpose.msra.mxu0 0.0
    %503 = vmatpush.xpose.msra.mxu0 0.0
    %504 = vmatpush.xpose.msra.mxu0 0.0
    %505 = vmatpush.xpose.msra.mxu0 0.0
    %506 = vmatpush.xpose.msra.mxu0 0.0
    %507 = vmatpush.xpose.msra.mxu0 0.0
    %508 = vmatpush.xpose.msra.mxu0 0.0
    %509 = vmatpush.xpose.msra.mxu0 0.0
    %510 = vmatpush.xpose.msra.mxu0 %v493
    %511 = vmatmul.f32.gmra.mxu0 %v491
    %v512 = vpop.f32.mrf.mxu0
    %v513 = vadd.f32 0.0, %v512
    %514 = vdwg.mxu0
    %v515 = vsel %vm85, %v513, -inf
    %516 = vmax.xlane.f32.xlu0 %v515
    %v517 = vpop.xlane.xlu0 %516
    %v518 = vsub.f32 %v513, %v517
    %v519 = vmul.f32 %v518, 1.442695
    %v520 = vpow.pop %v519
    %v521 = vsel %vm85, %v520, 0.0
    %522 = vadd.xlane.f32.xlu0 %v521
    %v523 = vpop.xlane.xlu0 %522
    %v524 = vrcp.pop %v523
    %v525 = vmul.f32 %v520, %v524
    %vm526 = vcmp.ge.s32.totalorder %v287, 24
    %vm527 = vcmp.lt.s32.totalorder %v287, 32
    %vm528 = vmand %vm526, %vm527
    %v529 = vsel %vm528, %v231, 0.0
    %v531 = vsel %vm85, %v525, 0
    %533 = vmatpush.msra.mxu0 0.0
    %534 = vmatpush.msra.mxu0 0.0
    %535 = vmatpush.msra.mxu0 0.0
    %536 = vmatpush.msra.mxu0 0.0
    %537 = vmatpush.msra.mxu0 0.0
    %538 = vmatpush.msra.mxu0 0.0
    %539 = vmatpush.msra.mxu0 0.0
    %540 = vmatpush.msra.mxu0 0.0
    %541 = vmatpush.msra.mxu0 0.0
    %542 = vmatpush.msra.mxu0 0.0
    %543 = vmatpush.msra.mxu0 0.0
    %544 = vmatpush.msra.mxu0 0.0
    %545 = vmatpush.msra.mxu0 0.0
    %546 = vmatpush.msra.mxu0 0.0
    %547 = vmatpush.msra.mxu0 0.0
    %548 = vmatpush.msra.mxu0 %v529
    %549 = vmatmul.f32.gmra.mxu0 %v531
    %v550 = vpop.f32.mrf.mxu0
    %v551 = vadd.f32 0.0, %v550
    %552 = vdwg.mxu0
    %v553 = vadd.f32 %v486, %v551
    %554 = vst.msk [vmem:[#allocation2] sm:$0xff] %vm125, %v553
    %556 = vrot.lane.b32.xlu0 %v285, 64
    %v557 = vpop.permute.xlu0 %556
    %v559 = vsel %vm85, %v257, 0
    %v561 = vsel %vm85, %v557, 0
    %563 = vmatpush.xpose.msra.mxu0 0.0
    %564 = vmatpush.xpose.msra.mxu0 0.0
    %565 = vmatpush.xpose.msra.mxu0 0.0
    %566 = vmatpush.xpose.msra.mxu0 0.0
    %567 = vmatpush.xpose.msra.mxu0 0.0
    %568 = vmatpush.xpose.msra.mxu0 0.0
    %569 = vmatpush.xpose.msra.mxu0 0.0
    %570 = vmatpush.xpose.msra.mxu0 0.0
    %571 = vmatpush.xpose.msra.mxu0 0.0
    %572 = vmatpush.xpose.msra.mxu0 0.0
    %573 = vmatpush.xpose.msra.mxu0 0.0
    %574 = vmatpush.xpose.msra.mxu0 0.0
    %575 = vmatpush.xpose.msra.mxu0 0.0
    %576 = vmatpush.xpose.msra.mxu0 0.0
    %577 = vmatpush.xpose.msra.mxu0 0.0
    %578 = vmatpush.xpose.msra.mxu0 %v561
    %579 = vmatmul.f32.gmra.mxu0 %v559
    %v580 = vpop.f32.mrf.mxu0
    %v581 = vadd.f32 0.0, %v580
    %582 = vdwg.mxu0
    %v583 = vsel %vm85, %v581, -inf
    %584 = vmax.xlane.f32.xlu0 %v583
    %v585 = vpop.xlane.xlu0 %584
    %v586 = vsub.f32 %v581, %v585
    %v587 = vmul.f32 %v586, 1.442695
    %v588 = vpow.pop %v587
    %v589 = vsel %vm85, %v588, 0.0
    %590 = vadd.xlane.f32.xlu0 %v589
    %v591 = vpop.xlane.xlu0 %590
    %v592 = vrcp.pop %v591
    %v593 = vmul.f32 %v588, %v592
    %v594 = vsel %vm329, %v234, 0.0
    %595 = vrot.lane.b32.xlu0 %v257, 120
    %v596 = vpop.permute.xlu0 %595
    %597 = vrot.lane.b32.xlu0 %v285, 56
    %v598 = vpop.permute.xlu0 %597
    %v599 = vsel %vm85, %v596, 0
    %v601 = vsel %vm85, %v598, 0
    %603 = vmatpush.xpose.msra.mxu0 0.0
    %604 = vmatpush.xpose.msra.mxu0 0.0
    %605 = vmatpush.xpose.msra.mxu0 0.0
    %606 = vmatpush.xpose.msra.mxu0 0.0
    %607 = vmatpush.xpose.msra.mxu0 0.0
    %608 = vmatpush.xpose.msra.mxu0 0.0
    %609 = vmatpush.xpose.msra.mxu0 0.0
    %610 = vmatpush.xpose.msra.mxu0 0.0
    %611 = vmatpush.xpose.msra.mxu0 0.0
    %612 = vmatpush.xpose.msra.mxu0 0.0
    %613 = vmatpush.xpose.msra.mxu0 0.0
    %614 = vmatpush.xpose.msra.mxu0 0.0
    %615 = vmatpush.xpose.msra.mxu0 0.0
    %616 = vmatpush.xpose.msra.mxu0 0.0
    %617 = vmatpush.xpose.msra.mxu0 0.0
    %618 = vmatpush.xpose.msra.mxu0 %v601
    %619 = vmatmul.f32.gmra.mxu0 %v599
    %v620 = vpop.f32.mrf.mxu0
    %v621 = vadd.f32 0.0, %v620
    %622 = vdwg.mxu0
    %v623 = vsel %vm85, %v621, -inf
    %624 = vmax.xlane.f32.xlu0 %v623
    %v625 = vpop.xlane.xlu0 %624
    %v626 = vsub.f32 %v621, %v625
    %v627 = vmul.f32 %v626, 1.442695
    %v628 = vpow.pop %v627
    %v629 = vsel %vm85, %v628, 0.0
    %630 = vadd.xlane.f32.xlu0 %v629
    %v631 = vpop.xlane.xlu0 %630
    %v632 = vrcp.pop %v631
    %v633 = vmul.f32 %v628, %v632
    %v634 = vsel %vm372, %v234, 0.0
    %v636 = vsel %vm85, %v633, 0
    %638 = vmatpush.msra.mxu0 0.0
    %639 = vmatpush.msra.mxu0 0.0
    %640 = vmatpush.msra.mxu0 0.0
    %641 = vmatpush.msra.mxu0 0.0
    %642 = vmatpush.msra.mxu0 0.0
    %643 = vmatpush.msra.mxu0 0.0
    %644 = vmatpush.msra.mxu0 0.0
    %645 = vmatpush.msra.mxu0 0.0
    %646 = vmatpush.msra.mxu0 0.0
    %647 = vmatpush.msra.mxu0 0.0
    %648 = vmatpush.msra.mxu0 0.0
    %649 = vmatpush.msra.mxu0 0.0
    %650 = vmatpush.msra.mxu0 0.0
    %651 = vmatpush.msra.mxu0 0.0
    %652 = vmatpush.msra.mxu0 0.0
    %653 = vmatpush.msra.mxu0 %v634
    %654 = vmatmul.f32.gmra.mxu0 %v636
    %v655 = vpop.f32.mrf.mxu0
    %v656 = vadd.f32 0.0, %v655
    %657 = vdwg.mxu0
    %v659 = vsel %vm85, %v593, 0
    %661 = vmatpush.msra.mxu0 0.0
    %662 = vmatpush.msra.mxu0 0.0
    %663 = vmatpush.msra.mxu0 0.0
    %664 = vmatpush.msra.mxu0 0.0
    %665 = vmatpush.msra.mxu0 0.0
    %666 = vmatpush.msra.mxu0 0.0
    %667 = vmatpush.msra.mxu0 0.0
    %668 = vmatpush.msra.mxu0 0.0
    %669 = vmatpush.msra.mxu0 0.0
    %670 = vmatpush.msra.mxu0 0.0
    %671 = vmatpush.msra.mxu0 0.0
    %672 = vmatpush.msra.mxu0 0.0
    %673 = vmatpush.msra.mxu0 0.0
    %674 = vmatpush.msra.mxu0 0.0
    %675 = vmatpush.msra.mxu0 0.0
    %676 = vmatpush.msra.mxu0 %v594
    %677 = vmatmul.f32.gmra.mxu0 %v659
    %v678 = vpop.f32.mrf.mxu0
    %v679 = vadd.f32 %v656, %v678
    %680 = vdwg.mxu0
    %681 = vrot.lane.b32.xlu0 %v257, 112
    %v682 = vpop.permute.xlu0 %681
    %683 = vrot.lane.b32.xlu0 %v285, 48
    %v684 = vpop.permute.xlu0 %683
    %v685 = vsel %vm85, %v682, 0
    %v687 = vsel %vm85, %v684, 0
    %689 = vmatpush.xpose.msra.mxu0 0.0
    %690 = vmatpush.xpose.msra.mxu0 0.0
    %691 = vmatpush.xpose.msra.mxu0 0.0
    %692 = vmatpush.xpose.msra.mxu0 0.0
    %693 = vmatpush.xpose.msra.mxu0 0.0
    %694 = vmatpush.xpose.msra.mxu0 0.0
    %695 = vmatpush.xpose.msra.mxu0 0.0
    %696 = vmatpush.xpose.msra.mxu0 0.0
    %697 = vmatpush.xpose.msra.mxu0 0.0
    %698 = vmatpush.xpose.msra.mxu0 0.0
    %699 = vmatpush.xpose.msra.mxu0 0.0
    %700 = vmatpush.xpose.msra.mxu0 0.0
    %701 = vmatpush.xpose.msra.mxu0 0.0
    %702 = vmatpush.xpose.msra.mxu0 0.0
    %703 = vmatpush.xpose.msra.mxu0 0.0
    %704 = vmatpush.xpose.msra.mxu0 %v687
    %705 = vmatmul.f32.gmra.mxu0 %v685
    %v706 = vpop.f32.mrf.mxu0
    %v707 = vadd.f32 0.0, %v706
    %708 = vdwg.mxu0
    %v709 = vsel %vm85, %v707, -inf
    %710 = vmax.xlane.f32.xlu0 %v709
    %v711 = vpop.xlane.xlu0 %710
    %v712 = vsub.f32 %v707, %v711
    %v713 = vmul.f32 %v712, 1.442695
    %v714 = vpow.pop %v713
    %v715 = vsel %vm85, %v714, 0.0
    %716 = vadd.xlane.f32.xlu0 %v715
    %v717 = vpop.xlane.xlu0 %716
    %v718 = vrcp.pop %v717
    %v719 = vmul.f32 %v714, %v718
    %v720 = vsel %vm461, %v234, 0.0
    %v722 = vsel %vm85, %v719, 0
    %724 = vmatpush.msra.mxu0 0.0
    %725 = vmatpush.msra.mxu0 0.0
    %726 = vmatpush.msra.mxu0 0.0
    %727 = vmatpush.msra.mxu0 0.0
    %728 = vmatpush.msra.mxu0 0.0
    %729 = vmatpush.msra.mxu0 0.0
    %730 = vmatpush.msra.mxu0 0.0
    %731 = vmatpush.msra.mxu0 0.0
    %732 = vmatpush.msra.mxu0 0.0
    %733 = vmatpush.msra.mxu0 0.0
    %734 = vmatpush.msra.mxu0 0.0
    %735 = vmatpush.msra.mxu0 0.0
    %736 = vmatpush.msra.mxu0 0.0
    %737 = vmatpush.msra.mxu0 0.0
    %738 = vmatpush.msra.mxu0 0.0
    %739 = vmatpush.msra.mxu0 %v720
    %740 = vmatmul.f32.gmra.mxu0 %v722
    %v741 = vpop.f32.mrf.mxu0
    %v742 = vadd.f32 0.0, %v741
    %743 = vdwg.mxu0
    %v744 = vadd.f32 %v679, %v742
    %745 = vrot.lane.b32.xlu0 %v257, 104
    %v746 = vpop.permute.xlu0 %745
    %747 = vrot.lane.b32.xlu0 %v285, 40
    %v748 = vpop.permute.xlu0 %747
    %v749 = vsel %vm85, %v746, 0
    %v751 = vsel %vm85, %v748, 0
    %753 = vmatpush.xpose.msra.mxu0 0.0
    %754 = vmatpush.xpose.msra.mxu0 0.0
    %755 = vmatpush.xpose.msra.mxu0 0.0
    %756 = vmatpush.xpose.msra.mxu0 0.0
    %757 = vmatpush.xpose.msra.mxu0 0.0
    %758 = vmatpush.xpose.msra.mxu0 0.0
    %759 = vmatpush.xpose.msra.mxu0 0.0
    %760 = vmatpush.xpose.msra.mxu0 0.0
    %761 = vmatpush.xpose.msra.mxu0 0.0
    %762 = vmatpush.xpose.msra.mxu0 0.0
    %763 = vmatpush.xpose.msra.mxu0 0.0
    %764 = vmatpush.xpose.msra.mxu0 0.0
    %765 = vmatpush.xpose.msra.mxu0 0.0
    %766 = vmatpush.xpose.msra.mxu0 0.0
    %767 = vmatpush.xpose.msra.mxu0 0.0
    %768 = vmatpush.xpose.msra.mxu0 %v751
    %769 = vmatmul.f32.gmra.mxu0 %v749
    %v770 = vpop.f32.mrf.mxu0
    %v771 = vadd.f32 0.0, %v770
    %772 = vdwg.mxu0
    %v773 = vsel %vm85, %v771, -inf
    %774 = vmax.xlane.f32.xlu0 %v773
    %v775 = vpop.xlane.xlu0 %774
    %v776 = vsub.f32 %v771, %v775
    %v777 = vmul.f32 %v776, 1.442695
    %v778 = vpow.pop %v777
    %v779 = vsel %vm85, %v778, 0.0
    %780 = vadd.xlane.f32.xlu0 %v779
    %v781 = vpop.xlane.xlu0 %780
    %v782 = vrcp.pop %v781
    %v783 = vmul.f32 %v778, %v782
    %v784 = vsel %vm528, %v234, 0.0
    %v786 = vsel %vm85, %v783, 0
    %788 = vmatpush.msra.mxu0 0.0
    %789 = vmatpush.msra.mxu0 0.0
    %790 = vmatpush.msra.mxu0 0.0
    %791 = vmatpush.msra.mxu0 0.0
    %792 = vmatpush.msra.mxu0 0.0
    %793 = vmatpush.msra.mxu0 0.0
    %794 = vmatpush.msra.mxu0 0.0
    %795 = vmatpush.msra.mxu0 0.0
    %796 = vmatpush.msra.mxu0 0.0
    %797 = vmatpush.msra.mxu0 0.0
    %798 = vmatpush.msra.mxu0 0.0
    %799 = vmatpush.msra.mxu0 0.0
    %800 = vmatpush.msra.mxu0 0.0
    %801 = vmatpush.msra.mxu0 0.0
    %802 = vmatpush.msra.mxu0 0.0
    %803 = vmatpush.msra.mxu0 %v784
    %804 = vmatmul.f32.gmra.mxu0 %v786
    %v805 = vpop.f32.mrf.mxu0
    %v806 = vadd.f32 0.0, %v805
    %807 = vdwg.mxu0
    %v808 = vadd.f32 %v744, %v806
    %809 = vst.msk [vmem:[#allocation2 + $0x8] sm:$0xff] %vm125, %v808
    %v810 = vld [vmem:[#allocation2] sm:$0xff]
    %v811 = vld [vmem:[#allocation2 + $0x8] sm:$0xff]
    %v812 = vld [vmem:[%s7] sm:$0xff]
    %v813 = vld [vmem:[%s7 + $0x8] sm:$0xff]
    %v814 = vld [vmem:[%s7 + $0x10] sm:$0xff]
    %v815 = vld [vmem:[%s7 + $0x18] sm:$0xff]
    %v816 = vld [vmem:[%s8] sm:$0x1]
    %v818 = vperm.slane %v816, 0
    %v821 = vsel %vm125, %v810, 0
    %v824 = vsel %vm125, %v811, 0
    %826 = vmatpush.msra.mxu0 0.0
    %827 = vmatpush.msra.mxu0 0.0
    %828 = vmatpush.msra.mxu0 0.0
    %829 = vmatpush.msra.mxu0 0.0
    %830 = vmatpush.msra.mxu0 0.0
    %831 = vmatpush.msra.mxu0 0.0
    %832 = vmatpush.msra.mxu0 0.0
    %833 = vmatpush.msra.mxu0 0.0
    %834 = vmatpush.msra.mxu0 0.0
    %835 = vmatpush.msra.mxu0 0.0
    %836 = vmatpush.msra.mxu0 0.0
    %837 = vmatpush.msra.mxu0 0.0
    %838 = vmatpush.msra.mxu0 %v815
    %839 = vmatpush.msra.mxu0 %v814
    %840 = vmatpush.msra.mxu0 %v813
    %841 = vmatpush.msra.mxu0 %v812
    %842 = vmatmul.f32.gmra.mxu0 %v821
    %v843 = vpop.f32.mrf.mxu0
    %v844 = vadd.f32 %v818, %v843
    %845 = vmatmul.f32.gmra.mxu0 %v824
    %v846 = vpop.f32.mrf.mxu0
    %v847 = vadd.f32 %v818, %v846
    %848 = vdwg.mxu0
    %v849 = vadd.f32 %v61, %v844
    %v850 = vadd.f32 %v62, %v847
    %v851 = vld [vmem:[%s4] sm:$0x1]
    %v852 = vmul.f32 %v849, %v849
    %v853 = vmul.f32 %v850, %v850
    %v854 = vsel %vm125, %v852, 0.0
    %855 = vadd.xlane.f32.xlu0 %v854
    %v856 = vpop.xlane.xlu0 %855
    %v857 = vsel %vm125, %v853, 0.0
    %858 = vadd.xlane.f32.xlu0 %v857
    %v859 = vpop.xlane.xlu0 %858
    %v860 = vmul.f32 %v856, %v138
    %v861 = vmul.f32 %v859, %v138
    %v863 = vperm.slane %v851, 0
    %v865 = vmul.f32 %v863, %v849
    %v866 = vmul.f32 %v863, %v850
    %v867 = vadd.f32 %v860, 1e-08
    %v868 = vadd.f32 %v861, 1e-08
    %v869 = vrsqrt.pop %v867
    %v870 = vmul.f32 %v869, %v867
    %v871 = vmul.f32 %v870, %v869
    %v872 = vmul.f32 0.5, %v871
    %v873 = vsub.f32 1.5, %v872
    %v874 = vmul.f32 %v869, %v873
    %vm875 = vweird.f32 %v867
    %vm876 = vweird.f32 %v869
    %vm877 = vmor %vm875, %vm876
    %v878 = vsel %vm877, %v869, %v874
    %v879 = vrsqrt.pop %v868
    %v880 = vmul.f32 %v879, %v868
    %v881 = vmul.f32 %v880, %v879
    %v882 = vmul.f32 0.5, %v881
    %v883 = vsub.f32 1.5, %v882
    %v884 = vmul.f32 %v879, %v883
    %vm885 = vweird.f32 %v868
    %vm886 = vweird.f32 %v879
    %vm887 = vmor %vm885, %vm886
    %v888 = vsel %vm887, %v879, %v884
    %v889 = vmul.f32 %v865, %v878
    %v890 = vmul.f32 %v866, %v888
    %v891 = vld [vmem:[#allocation3] sm:$0xff]
    %v892 = vld [vmem:[#allocation3 + $0x8] sm:$0xff]
    %v893 = vld [vmem:[#allocation3 + $0x10] sm:$0xff]
    %v894 = vld [vmem:[#allocation3 + $0x18] sm:$0xff]
    %v895 = vld [vmem:[%s10] sm:$0x1]
    %v897 = vperm.slane %v895, 0
    %v900 = vsel %vm125, %v889, 0
    %v903 = vsel %vm125, %v890, 0
    %905 = vmatpush.msra.mxu0 0.0
    %906 = vmatpush.msra.mxu0 0.0
    %907 = vmatpush.msra.mxu0 0.0
    %908 = vmatpush.msra.mxu0 0.0
    %909 = vmatpush.msra.mxu0 0.0
    %910 = vmatpush.msra.mxu0 0.0
    %911 = vmatpush.msra.mxu0 0.0
    %912 = vmatpush.msra.mxu0 0.0
    %913 = vmatpush.msra.mxu0 0.0
    %914 = vmatpush.msra.mxu0 0.0
    %915 = vmatpush.msra.mxu0 0.0
    %916 = vmatpush.msra.mxu0 0.0
    %917 = vmatpush.msra.mxu0 %v894
    %918 = vmatpush.msra.mxu0 %v893
    %919 = vmatpush.msra.mxu0 %v892
    %920 = vmatpush.msra.mxu0 %v891
    %921 = vmatmul.f32.gmra.mxu0 %v900
    %v922 = vpop.f32.mrf.mxu0
    %v923 = vadd.f32 %v897, %v922
    %924 = vmatmul.f32.gmra.mxu0 %v903
    %v925 = vpop.f32.mrf.mxu0
    %v926 = vadd.f32 %v897, %v925
    %927 = vdwg.mxu0
    %v928 = vxor.u32 %v923, 2147483648
    %v929 = vxor.u32 %v926, 2147483648
    %v930 = vmul.f32 %v928, 1.442695
    %v931 = vpow.pop %v930
    %v932 = vmul.f32 %v929, 1.442695
    %v933 = vpow.pop %v932
    %v934 = vadd.f32 %v931, 1.0
    %v935 = vadd.f32 %v933, 1.0
    %v936 = vrcp.pop %v934
    %v937 = vmul.f32 %v934, %v936
    %v938 = vsub.f32 1.0, %v937
    %v939 = vmul.f32 %v936, %v938
    %v940 = vadd.f32 %v936, %v939
    %vm941 = vweird.f32 %v934
    %vm942 = vweird.f32 %v936
    %vm943 = vmor %vm941, %vm942
    %v944 = vsel %vm943, %v936, %v940
    %v945 = vand.u32 2147483647, %v934
    %vm946 = vcmp.eq.f32.partialorder %v945, 8.507059e+37
    %v947 = vand.u32 %v934, 2147483648
    %v948 = vor.u32 1.1754944e-38, %v947
    %v949 = vsel %vm946, %v948, %v944
    %v950 = vmul.f32 1.0, %v949
    %v951 = vrcp.pop %v935
    %v952 = vmul.f32 %v935, %v951
    %v953 = vsub.f32 1.0, %v952
    %v954 = vmul.f32 %v951, %v953
    %v955 = vadd.f32 %v951, %v954
    %vm956 = vweird.f32 %v935
    %vm957 = vweird.f32 %v951
    %vm958 = vmor %vm956, %vm957
    %v959 = vsel %vm958, %v951, %v955
    %v960 = vand.u32 2147483647, %v935
    %vm961 = vcmp.eq.f32.partialorder %v960, 8.507059e+37
    %v962 = vand.u32 %v935, 2147483648
    %v963 = vor.u32 1.1754944e-38, %v962
    %v964 = vsel %vm961, %v963, %v959
    %v965 = vmul.f32 1.0, %v964
    %v966 = vmul.f32 %v923, %v950
    %v967 = vmul.f32 %v926, %v965
    %970 = vrot.lane.b32.xlu0 %v923, 64
    %v971 = vpop.permute.xlu0 %970
    %972 = vrot.lane.b32.xlu0 %v926, 64
    %v973 = vpop.permute.xlu0 %972
    %v976 = vmul.f32 %v966, %v971
    %v977 = vmul.f32 %v967, %v973
    %v978 = vld [vmem:[%s11] sm:$0xff]
    %v979 = vld [vmem:[%s11 + $0x8] sm:$0xff]
    %v980 = vld [vmem:[%s11 + $0x10] sm:$0xff]
    %v981 = vld [vmem:[%s11 + $0x18] sm:$0xff]
    %v982 = vld [vmem:[%s11 + $0x20] sm:$0xff]
    %v983 = vld [vmem:[%s11 + $0x28] sm:$0xff]
    %v984 = vld [vmem:[%s11 + $0x30] sm:$0xff]
    %v985 = vld [vmem:[%s11 + $0x38] sm:$0xff]
    %v986 = vld [vmem:[%s12] sm:$0x1]
    %v988 = vperm.slane %v986, 0
    %vm990 = vcmask 523264
    %v992 = vsel %vm990, %v976, 0
    %v995 = vsel %vm990, %v977, 0
    %997 = vmatpush.msra.mxu0 0.0
    %998 = vmatpush.msra.mxu0 0.0
    %999 = vmatpush.msra.mxu0 0.0
    %1000 = vmatpush.msra.mxu0 0.0
    %1001 = vmatpush.msra.mxu0 0.0
    %1002 = vmatpush.msra.mxu0 0.0
    %1003 = vmatpush.msra.mxu0 0.0
    %1004 = vmatpush.msra.mxu0 0.0
    %1005 = vmatpush.msra.mxu0 %v985
    %1006 = vmatpush.msra.mxu0 %v984
    %1007 = vmatpush.msra.mxu0 %v983
    %1008 = vmatpush.msra.mxu0 %v982
    %1009 = vmatpush.msra.mxu0 %v981
    %1010 = vmatpush.msra.mxu0 %v980
    %1011 = vmatpush.msra.mxu0 %v979
    %1012 = vmatpush.msra.mxu0 %v978
    %1013 = vmatmul.f32.gmra.mxu0 %v992
    %v1014 = vpop.f32.mrf.mxu0
    %v1015 = vadd.f32 %v988, %v1014
    %1016 = vmatmul.f32.gmra.mxu0 %v995
    %v1017 = vpop.f32.mrf.mxu0
    %v1018 = vadd.f32 %v988, %v1017
    %1019 = vdwg.mxu0
    %v1020 = vadd.f32 %v849, %v1015
    %v1021 = vadd.f32 %v850, %v1018
    %1022 = vst.msk [vmem:[#allocation6] sm:$0xff] %vm125, %v1020
    %1023 = vst.msk [vmem:[#allocation6 + $0x8] sm:$0xff] %vm125, %v1021
    // Predicated region
    $region58: #{tpu_custom_call.1} parent=1 // pred_check
      _
    $region59: #{tpu_custom_call.1} parent=1 // pred_check_branch
      %1025 = sbr.rel (0) target = $region61
    $region60: #{tpu_custom_call.1} parent=1 // pred_region
      %1027 = vsyncadd [#allocation5], 0
      %s1028 = sshll.u32 [#allocation6], 4
      %s1029 = int_to_ptr.vmem [resolvable:$true] %s1028
      %s1030 = sshll.u32 %s13, 4
      %s1031 = int_to_ptr.hbm [resolvable:$true] %s1030
      %1036 = dma.vmem_to_hbm [thread:$0]  %s1029, 256, %s1031, [#allocation5], 128, 128, 8
    $region61: #{tpu_custom_call.1} parent=1 // pred_fallthru
      _
    // Predicated region
    $region62: #{tpu_custom_call.1} parent=1 // pred_check
      _
    $region63: #{tpu_custom_call.1} parent=1 // pred_check_branch
      %1038 = sbr.rel (0) target = $region65
    $region64: #{tpu_custom_call.1} parent=1 // pred_region
      %1040 = dma.done [#allocation5], 256
    $region65: #{tpu_custom_call.1} parent=1 // pred_fallthru
      _
    %1041 = vsyncpa [#allocation4], 1
    %1042 = vsyncpa [#allocation5], 1

</llo_original>
